<compile_context>
chip_gen: v5e
topology: v5e:2x2
jax: 0.10.0
libtpu: 0.0.40
codegen_flags: <defaults>
</compile_context>

<pallas_src>
import math
import jax
import jax.numpy as jnp
from jax.experimental import pallas as pl
from jax.experimental.pallas import tpu as pltpu

LOG_2PI = math.log(2.0 * math.pi)
LANE = 128          # lane width; action / value outputs are padded to this
SUBLANE = 8
MAX_TILE_B = 256    # batch row-tile cap (sized for v7x's 64 MiB VMEM budget)


def _round_up(x, m):
    return (x + m - 1) // m * m


# ------------------------------ Pallas kernels ------------------------------ #

def value_kernel(feat_ref, aw1_ref, ab1_ref, cw1_ref, cb1_ref, cw2_ref, cb2_ref,
                 val_ref):
    """Fused actor backbone + critic MLP; hidden activations stay in VMEM."""
    h = jnp.dot(feat_ref[...], aw1_ref[...],
                preferred_element_type=jnp.float32) + ab1_ref[...]
    h = jnp.maximum(h, 0.0)                                       # [tb, 512]
    g = jnp.dot(h, cw1_ref[...],
                preferred_element_type=jnp.float32) + cb1_ref[...]
    g = jnp.maximum(g, 0.0)                                       # [tb, 256]
    # critic head padded to 128 output lanes -> unmasked lane-dense store
    val_ref[...] = (jnp.dot(g, cw2_ref[...], preferred_element_type=jnp.float32)
                    + cb2_ref[...]).astype(val_ref.dtype)


def sample_kernel(feat_ref, aw1_ref, ab1_ref, aw2_ref, ab2_ref, std_ref,
                  noise_ref, act_ref, logp_ref):
    """Fused actor forward + diagonal-Gaussian sample.

    std / noise are zero in the padded action lanes, so sum(z*z) covers only the
    real action dims; the batch-independent -(logdet + D*log 2pi)/2 constant is
    added by the wrapper (hoisted out of the kernel)."""
    h = jnp.dot(feat_ref[...], aw1_ref[...],
                preferred_element_type=jnp.float32) + ab1_ref[...]
    h = jnp.maximum(h, 0.0)
    mean = jnp.dot(h, aw2_ref[...],
                   preferred_element_type=jnp.float32) + ab2_ref[...]
    z = noise_ref[...]
    act_ref[...] = (mean + std_ref[...] * z).astype(act_ref.dtype)
    maha = jnp.sum(z * z, axis=-1, keepdims=True)                 # [tb, 1]
    logp_ref[...] = jnp.broadcast_to(-0.5 * maha, logp_ref.shape).astype(logp_ref.dtype)


def eval_kernel(feat_ref, aw1_ref, ab1_ref, aw2_ref, ab2_ref,
                cw1_ref, cb1_ref, cw2_ref, cb2_ref, ivar_ref, act_ref,
                logp_ref, val_ref):
    """Fused actor + Gaussian log-prob + critic (PPO evaluate path).

    ivar is zero in padded action lanes so padding contributes nothing."""
    h = jnp.dot(feat_ref[...], aw1_ref[...],
                preferred_element_type=jnp.float32) + ab1_ref[...]
    h = jnp.maximum(h, 0.0)
    mean = jnp.dot(h, aw2_ref[...],
                   preferred_element_type=jnp.float32) + ab2_ref[...]
    diff = act_ref[...] - mean
    maha = jnp.sum(diff * diff * ivar_ref[...], axis=-1, keepdims=True)
    logp_ref[...] = jnp.broadcast_to(-0.5 * maha, logp_ref.shape).astype(logp_ref.dtype)
    g = jnp.dot(h, cw1_ref[...],
                preferred_element_type=jnp.float32) + cb1_ref[...]
    g = jnp.maximum(g, 0.0)
    val_ref[...] = (jnp.dot(g, cw2_ref[...], preferred_element_type=jnp.float32)
                    + cb2_ref[...]).astype(val_ref.dtype)


# ------------------------------ call wrappers ------------------------------- #

def _row_spec(tile_b, cols):
    # batch-tiled block (rows advance with the grid)
    return pl.BlockSpec((tile_b, cols), lambda i: (i, 0))


def _resident_spec(arr):
    # full-array block with a constant index_map -> stays resident across grid steps
    return pl.BlockSpec(arr.shape, lambda i: (0, 0))


def _batch_tiles(B):
    tile_b = min(_round_up(max(B, 1), SUBLANE), MAX_TILE_B)
    b_pad = _round_up(max(B, 1), tile_b)
    return tile_b, b_pad


_PARALLEL = pltpu.CompilerParams(dimension_semantics=("parallel",))


def value_forward(feat_p, aw1, ab1, cw1, cb1, cw2, cb2, tile_b):
    b_pad, f_pad = feat_p.shape
    return pl.pallas_call(
        value_kernel,
        out_shape=jax.ShapeDtypeStruct((b_pad, LANE), jnp.float32),
        grid=(b_pad // tile_b,),
        in_specs=[_row_spec(tile_b, f_pad)]
                 + [_resident_spec(a) for a in (aw1, ab1, cw1, cb1, cw2, cb2)],
        out_specs=_row_spec(tile_b, LANE),
        compiler_params=_PARALLEL,
    )(feat_p, aw1, ab1, cw1, cb1, cw2, cb2)


def sample_forward(feat_p, aw1, ab1, aw2, ab2, std_p, noise_p, tile_b):
    b_pad, f_pad = feat_p.shape
    return pl.pallas_call(
        sample_kernel,
        out_shape=(jax.ShapeDtypeStruct((b_pad, LANE), jnp.float32),
                   jax.ShapeDtypeStruct((b_pad, LANE), jnp.float32)),
        grid=(b_pad // tile_b,),
        in_specs=[_row_spec(tile_b, f_pad),
                  _resident_spec(aw1), _resident_spec(ab1),
                  _resident_spec(aw2), _resident_spec(ab2),
                  _resident_spec(std_p),
                  _row_spec(tile_b, LANE)],
        out_specs=(_row_spec(tile_b, LANE), _row_spec(tile_b, LANE)),
        compiler_params=_PARALLEL,
    )(feat_p, aw1, ab1, aw2, ab2, std_p, noise_p)


def eval_forward(feat_p, aw1, ab1, aw2, ab2, cw1, cb1, cw2, cb2, ivar_p, act_p,
                 tile_b):
    b_pad, f_pad = feat_p.shape
    return pl.pallas_call(
        eval_kernel,
        out_shape=(jax.ShapeDtypeStruct((b_pad, LANE), jnp.float32),
                   jax.ShapeDtypeStruct((b_pad, LANE), jnp.float32)),
        grid=(b_pad // tile_b,),
        in_specs=[_row_spec(tile_b, f_pad)]
                 + [_resident_spec(a) for a in
                    (aw1, ab1, aw2, ab2, cw1, cb1, cw2, cb2, ivar_p)]
                 + [_row_spec(tile_b, LANE)],
        out_specs=(_row_spec(tile_b, LANE), _row_spec(tile_b, LANE)),
        compiler_params=_PARALLEL,
    )(feat_p, aw1, ab1, aw2, ab2, cw1, cb1, cw2, cb2, ivar_p, act_p)


# -------------------------------- module glue -------------------------------- #

def _linear_init(key, fan_in, fan_out):
    """PyTorch nn.Linear default init: U(-1/sqrt(fan_in), 1/sqrt(fan_in))."""
    kw, kb = jax.random.split(key)
    bound = 1.0 / math.sqrt(fan_in)
    w = jax.random.uniform(kw, (fan_in, fan_out), jnp.float32, -bound, bound)
    b = jax.random.uniform(kb, (fan_out,), jnp.float32, -bound, bound)
    return w, b


class ActorCriticPallas:
    def __init__(self, action_dim, action_std, img_shape=(4, 16, 16),
                 cmd_dim=6, spd_dim=1, seed=0):
        self.action_dim = action_dim
        self.action_var = jnp.full((action_dim,), action_std * action_std,
                                   jnp.float32)
        self.img_shape = img_shape
        c, h, w = img_shape
        self.f_in = c * h * w + cmd_dim + spd_dim
        self.f_pad = _round_up(self.f_in, LANE)

        key = jax.random.PRNGKey(seed)
        k1, k2, k3, k4 = jax.random.split(key, 4)
        # actor stub params (see TODO(synk) at top) + critic Linear(512,256)->ReLU->Linear(256,1)
        self.a_w1, self.a_b1 = _linear_init(k1, self.f_in, 512)
        self.a_w2, self.a_b2 = _linear_init(k2, 512, action_dim)
        self.c_w1, self.c_b1 = _linear_init(k3, 512, 256)
        self.c_w2, self.c_b2 = _linear_init(k4, 256, 1)

        # (8,128)-friendly padded copies used by the kernels (padding is zero so
        # padded lanes/rows contribute nothing to the matmuls).
        # TODO(synk): on v6e/v7x the padded weights could be stored in bf16 with
        #             f32 accumulation; kept f32 so v5e behaves identically.
        self._aw1 = jnp.pad(self.a_w1, ((0, self.f_pad - self.f_in), (0, 0)))
        self._ab1 = self.a_b1[None, :]
        self._aw2 = jnp.pad(self.a_w2, ((0, 0), (0, LANE - action_dim)))
        self._ab2 = jnp.pad(self.a_b2, (0, LANE - action_dim))[None, :]
        self._cw1 = self.c_w1
        self._cb1 = self.c_b1[None, :]
        self._cw2 = jnp.pad(self.c_w2, ((0, 0), (0, LANE - 1)))
        self._cb2 = jnp.pad(self.c_b2, (0, LANE - 1))[None, :]

    def set_action_std(self, new_action_std):
        self.action_var = jnp.full((self.action_dim,),
                                   new_action_std * new_action_std, jnp.float32)

    # plain-JAX glue: flatten NCHW image, concat [img | cmd | spd], pad to (b_pad, f_pad)
    def _features(self, s_img, s_cmd, s_spd):
        B = s_img.shape[0]
        tile_b, b_pad = _batch_tiles(B)
        feat = jnp.concatenate(
            [s_img.reshape(B, -1).astype(jnp.float32),
             s_cmd.astype(jnp.float32),
             s_spd.astype(jnp.float32)], axis=-1)
        feat_p = jnp.pad(feat, ((0, b_pad - B), (0, self.f_pad - self.f_in)))
        return feat_p, B, tile_b

    def get_value(self, s, s_d, s_s):
        feat_p, B, tile_b = self._features(s, s_d, s_s)
        slab = value_forward(feat_p, self._aw1, self._ab1, self._cw1, self._cb1,
                             self._cw2, self._cb2, tile_b)
        return slab[:B, :1]                                      # [B, 1]

    def get_action_and_log_prob(self, s_img, s_cmd, s_spd, B, rng):
        feat_p, B, tile_b = self._features(s_img, s_cmd, s_spd)
        b_pad = feat_p.shape[0]
        D = self.action_dim
        var = self.action_var + 1e-6                             # matches torch epsilon
        std_p = jnp.pad(jnp.sqrt(var)[None, :], ((0, 0), (0, LANE - D)))
        noise_p = jnp.pad(jax.random.normal(rng, (b_pad, D), jnp.float32),
                          ((0, 0), (0, LANE - D)))
        act_slab, logp_slab = sample_forward(feat_p, self._aw1, self._ab1,
                                             self._aw2, self._ab2,
                                             std_p, noise_p, tile_b)
        logp_const = -0.5 * (jnp.sum(jnp.log(var)) + D * LOG_2PI)  # hoisted constant
        action = act_slab[:B, :D]
        logp = logp_slab[:B, 0] + logp_const
        return action, logp

    def evaluate(self, s_img, s_cmd, s_spd, actions, B):
        feat_p, B, tile_b = self._features(s_img, s_cmd, s_spd)
        b_pad = feat_p.shape[0]
        D = self.action_dim
        var = self.action_var                                    # no epsilon (matches torch)
        ivar_p = jnp.pad((1.0 / var)[None, :], ((0, 0), (0, LANE - D)))
        act_p = jnp.pad(actions.astype(jnp.float32),
                        ((0, b_pad - B), (0, LANE - D)))
        logp_slab, val_slab = eval_forward(feat_p, self._aw1, self._ab1,
                                           self._aw2, self._ab2,
                                           self._cw1, self._cb1,
                                           self._cw2, self._cb2,
                                           ivar_p, act_p, tile_b)
        logdet = jnp.sum(jnp.log(var))
        logp = logp_slab[:B, 0] + (-0.5 * (logdet + D * LOG_2PI))
        value = val_slab[:B, 0]
        # entropy of a diagonal Gaussian is a constant of action_var -> host compute
        entropy = 0.5 * D * (1.0 + LOG_2PI) + 0.5 * logdet
        ent = jnp.broadcast_to(entropy.astype(jnp.float32), (B,))
        return logp, value, ent


# ----------------------------------- main ------------------------------------ #

if __name__ == "__main__":
    B, C, H, W = 8, 4, 16, 16
    CMD, SPD = 6, 1
    ACTION_DIM = 2
    ACTION_STD = 0.5

    key = jax.random.PRNGKey(0)
    k_img, k_cmd, k_spd, k_act, k_sample = jax.random.split(key, 5)

    s_img = jax.random.normal(k_img, (B, C, H, W), jnp.float32)   # NCHW
    s_cmd = jax.random.normal(k_cmd, (B, CMD), jnp.float32)
    s_spd = jax.random.normal(k_spd, (B, SPD), jnp.float32)
    old_actions = jax.random.normal(k_act, (B, ACTION_DIM), jnp.float32)

    model = ActorCriticPallas(ACTION_DIM, ACTION_STD, img_shape=(C, H, W),
                              cmd_dim=CMD, spd_dim=SPD)

    value = model.get_value(s_img, s_cmd, s_spd)
    action, logp = model.get_action_and_log_prob(s_img, s_cmd, s_spd, B, k_sample)
    e_logp, e_value, e_ent = model.evaluate(s_img, s_cmd, s_spd, old_actions, B)
    jax.block_until_ready((value, action, logp, e_logp, e_value, e_ent))

    # shape contract (matches the torch module)
    assert value.shape == (B, 1)
    assert action.shape == (B, ACTION_DIM)
    assert logp.shape == (B,)
    assert e_logp.shape == (B,)
    assert e_value.shape == (B,)
    assert e_ent.shape == (B,)
    assert all(bool(jnp.all(jnp.isfinite(x))) for x in
               (value, action, logp, e_logp, e_value, e_ent))

    # numerical check against a plain-JAX reference of the same stub network
    feat = jnp.concatenate([s_img.reshape(B, -1), s_cmd, s_spd], axis=-1)
    h_ref = jnp.maximum(feat @ model.a_w1 + model.a_b1, 0.0)
    mean_ref = h_ref @ model.a_w2 + model.a_b2
    g_ref = jnp.maximum(h_ref @ model.c_w1 + model.c_b1, 0.0)
    val_ref = (g_ref @ model.c_w2 + model.c_b2)[:, 0]
    var_ref = model.action_var
    diff = old_actions - mean_ref
    logp_ref = -0.5 * (jnp.sum(diff * diff / var_ref, axis=-1)
                       + jnp.sum(jnp.log(var_ref)) + ACTION_DIM * LOG_2PI)
    ent_ref = 0.5 * ACTION_DIM * (1.0 + LOG_2PI) + 0.5 * jnp.sum(jnp.log(var_ref))

    assert bool(jnp.allclose(value[:, 0], val_ref, atol=5e-2, rtol=5e-2))
    assert bool(jnp.allclose(e_value, val_ref, atol=5e-2, rtol=5e-2))
    assert bool(jnp.allclose(e_logp, logp_ref, atol=5e-2, rtol=5e-2))
    assert bool(jnp.allclose(e_ent, jnp.broadcast_to(ent_ref, (B,)), atol=1e-5))

    print("KERNEL_OK")
</pallas_src>

<mosaic_0001>
module attributes {stable_mosaic.version = 11 : i64} {
  func.func @value_kernel(%arg0: i32, %arg1: memref<8x1152xf32, #tpu.memory_space<vmem>>, %arg2: memref<1152x512xf32, #tpu.memory_space<vmem>>, %arg3: memref<1x512xf32, #tpu.memory_space<vmem>>, %arg4: memref<512x256xf32, #tpu.memory_space<vmem>>, %arg5: memref<1x256xf32, #tpu.memory_space<vmem>>, %arg6: memref<256x128xf32, #tpu.memory_space<vmem>>, %arg7: memref<1x128xf32, #tpu.memory_space<vmem>>, %arg8: memref<8x128xf32, #tpu.memory_space<vmem>>) attributes {dimension_semantics = [#tpu.dimension_semantics<parallel>], iteration_bounds = array<i64: 1>, scalar_prefetch = 0 : i64, scratch_operands = 0 : i64, tpu.core_type = #tpu.core_type<tc>, window_params = [{transform_indices = @transform_0, window_bounds = array<i64: 8, 1152>}, {pipeline_mode = #tpu.pipeline_mode<synchronous>, transform_indices = @transform_1, window_bounds = array<i64: 1152, 512>}, {pipeline_mode = #tpu.pipeline_mode<synchronous>, transform_indices = @transform_2, window_bounds = array<i64: 1, 512>}, {pipeline_mode = #tpu.pipeline_mode<synchronous>, transform_indices = @transform_3, window_bounds = array<i64: 512, 256>}, {pipeline_mode = #tpu.pipeline_mode<synchronous>, transform_indices = @transform_4, window_bounds = array<i64: 1, 256>}, {pipeline_mode = #tpu.pipeline_mode<synchronous>, transform_indices = @transform_5, window_bounds = array<i64: 256, 128>}, {pipeline_mode = #tpu.pipeline_mode<synchronous>, transform_indices = @transform_6, window_bounds = array<i64: 1, 128>}, {transform_indices = @transform_7, window_bounds = array<i64: 8, 128>}]} {
    %c0 = arith.constant 0 : index
    %c0_0 = arith.constant 0 : index
    %0 = vector.load %arg1[%c0, %c0_0] : memref<8x1152xf32, #tpu.memory_space<vmem>>, vector<8x1152xf32>
    %c0_1 = arith.constant 0 : index
    %c0_2 = arith.constant 0 : index
    %1 = vector.load %arg2[%c0_1, %c0_2] : memref<1152x512xf32, #tpu.memory_space<vmem>>, vector<1152x512xf32>
    %cst = arith.constant dense<0.000000e+00> : vector<8x512xf32>
    %2 = tpu.matmul %0, %1, %cst {dimension_numbers = #tpu.dot_dimension_numbers<[1], [0], [0], [1], [0, 0, 1, 1], [], []>} : vector<8x1152xf32>, vector<1152x512xf32>, vector<8x512xf32> -> vector<8x512xf32>
    %c0_3 = arith.constant 0 : index
    %c0_4 = arith.constant 0 : index
    %3 = vector.load %arg3[%c0_3, %c0_4] : memref<1x512xf32, #tpu.memory_space<vmem>>, vector<1x512xf32>
    %4 = vector.broadcast %3 : vector<1x512xf32> to vector<8x512xf32>
    %5 = arith.addf %2, %4 : vector<8x512xf32>
    %cst_5 = arith.constant 0.000000e+00 : f32
    %6 = vector.broadcast %cst_5 : f32 to vector<8x512xf32>
    %7 = arith.maximumf %5, %6 : vector<8x512xf32>
    %c0_6 = arith.constant 0 : index
    %c0_7 = arith.constant 0 : index
    %8 = vector.load %arg4[%c0_6, %c0_7] : memref<512x256xf32, #tpu.memory_space<vmem>>, vector<512x256xf32>
    %cst_8 = arith.constant dense<0.000000e+00> : vector<8x256xf32>
    %9 = tpu.matmul %7, %8, %cst_8 {dimension_numbers = #tpu.dot_dimension_numbers<[1], [0], [0], [1], [0, 0, 1, 1], [], []>} : vector<8x512xf32>, vector<512x256xf32>, vector<8x256xf32> -> vector<8x256xf32>
    %c0_9 = arith.constant 0 : index
    %c0_10 = arith.constant 0 : index
    %10 = vector.load %arg5[%c0_9, %c0_10] : memref<1x256xf32, #tpu.memory_space<vmem>>, vector<1x256xf32>
    %11 = vector.broadcast %10 : vector<1x256xf32> to vector<8x256xf32>
    %12 = arith.addf %9, %11 : vector<8x256xf32>
    %cst_11 = arith.constant 0.000000e+00 : f32
    %13 = vector.broadcast %cst_11 : f32 to vector<8x256xf32>
    %14 = arith.maximumf %12, %13 : vector<8x256xf32>
    %c0_12 = arith.constant 0 : index
    %c0_13 = arith.constant 0 : index
    %15 = vector.load %arg6[%c0_12, %c0_13] : memref<256x128xf32, #tpu.memory_space<vmem>>, vector<256x128xf32>
    %cst_14 = arith.constant dense<0.000000e+00> : vector<8x128xf32>
    %16 = tpu.matmul %14, %15, %cst_14 {dimension_numbers = #tpu.dot_dimension_numbers<[1], [0], [0], [1], [0, 0, 1, 1], [], []>} : vector<8x256xf32>, vector<256x128xf32>, vector<8x128xf32> -> vector<8x128xf32>
    %c0_15 = arith.constant 0 : index
    %c0_16 = arith.constant 0 : index
    %17 = vector.load %arg7[%c0_15, %c0_16] : memref<1x128xf32, #tpu.memory_space<vmem>>, vector<1x128xf32>
    %18 = vector.broadcast %17 : vector<1x128xf32> to vector<8x128xf32>
    %19 = arith.addf %16, %18 : vector<8x128xf32>
    %c0_17 = arith.constant 0 : index
    %c0_18 = arith.constant 0 : index
    %20 = vector.load %arg8[%c0_17, %c0_18] : memref<8x128xf32, #tpu.memory_space<vmem>>, vector<8x128xf32>
    tpu.vector_store %arg8[%c0_17, %c0_18], %19 {strides = array<i32>} : memref<8x128xf32, #tpu.memory_space<vmem>>, vector<8x128xf32>,
    return
  }
  func.func @transform_0(%arg0: i32) -> (i32, i32) {
    %c0_i32 = arith.constant 0 : i32
    %c0_i32_0 = arith.constant 0 : i32
    return %arg0, %c0_i32 : i32, i32
  }
  func.func @transform_1(%arg0: i32) -> (i32, i32) {
    %c0_i32 = arith.constant 0 : i32
    %c0_i32_0 = arith.constant 0 : i32
    %c0_i32_1 = arith.constant 0 : i32
    return %c0_i32, %c0_i32_0 : i32, i32
  }
  func.func @transform_2(%arg0: i32) -> (i32, i32) {
    %c0_i32 = arith.constant 0 : i32
    %c0_i32_0 = arith.constant 0 : i32
    %c0_i32_1 = arith.constant 0 : i32
    return %c0_i32, %c0_i32_0 : i32, i32
  }
  func.func @transform_3(%arg0: i32) -> (i32, i32) {
    %c0_i32 = arith.constant 0 : i32
    %c0_i32_0 = arith.constant 0 : i32
    %c0_i32_1 = arith.constant 0 : i32
    return %c0_i32, %c0_i32_0 : i32, i32
  }
  func.func @transform_4(%arg0: i32) -> (i32, i32) {
    %c0_i32 = arith.constant 0 : i32
    %c0_i32_0 = arith.constant 0 : i32
    %c0_i32_1 = arith.constant 0 : i32
    return %c0_i32, %c0_i32_0 : i32, i32
  }
  func.func @transform_5(%arg0: i32) -> (i32, i32) {
    %c0_i32 = arith.constant 0 : i32
    %c0_i32_0 = arith.constant 0 : i32
    %c0_i32_1 = arith.constant 0 : i32
    return %c0_i32, %c0_i32_0 : i32, i32
  }
  func.func @transform_6(%arg0: i32) -> (i32, i32) {
    %c0_i32 = arith.constant 0 : i32
    %c0_i32_0 = arith.constant 0 : i32
    %c0_i32_1 = arith.constant 0 : i32
    return %c0_i32, %c0_i32_0 : i32, i32
  }
  func.func @transform_7(%arg0: i32) -> (i32, i32) {
    %c0_i32 = arith.constant 0 : i32
    %c0_i32_0 = arith.constant 0 : i32
    return %arg0, %c0_i32 : i32, i32
  }
}

</mosaic_0001>

<llo_original>
// kernel: tpu_custom_call.1
$region0: #{tpu_custom_call.1}
  #allocation0 [shape = 'u32[]', space=smem, size = 0x4, offset = 0x4, fixed_abs, tag = 'smem constant byte address 0x4 - core index']
  #allocation1 [shape = 'u32[72,128]{1,0:T(1,128)}', space=vmem, size = 0x9000, scoped, tag = 'internal scratch']
  %s0 = inlined_call_operand.hbm [shape: f32[8,1152], index: 0, kind: input, shape index: {}]
  %s1 = inlined_call_operand.hbm [shape: f32[1152,512], index: 1, kind: input, shape index: {}]
  %s2 = inlined_call_operand.hbm [shape: f32[1,512], index: 2, kind: input, shape index: {}]
  %s3 = inlined_call_operand.hbm [shape: f32[512,256], index: 3, kind: input, shape index: {}]
  %s4 = inlined_call_operand.hbm [shape: f32[1,256], index: 4, kind: input, shape index: {}]
  %s5 = inlined_call_operand.hbm [shape: f32[256,128], index: 5, kind: input, shape index: {}]
  %s6 = inlined_call_operand.hbm [shape: f32[1,128], index: 6, kind: input, shape index: {}]
  %s7 = inlined_call_operand.hbm [shape: f32[8,128], index: 7, kind: output, shape index: {}]
  %s8 = sld [smem:[#allocation0]]
  $region66: #{tpu_custom_call.1} parent=0
    _
  %s10 = ssub.s32 1, %s8
  %s11 = scalar_select 0, %s10, %s8
  $region1: #{tpu_custom_call.1} parent=0
    #allocation2 [shape = 'u8[36864]{0}', space=vmem, size = 0x9000, scoped, tag = 'input window, operand 0, single buffered']
    #allocation3 [shape = 's32[1]{0}', space=sflag, size = 0x4, scoped, tag = 'scoped memory for tpu_custom_call.1']
    #allocation4 [shape = 's32[1]{0}', space=sflag, size = 0x4, scoped, tag = 'scoped memory for tpu_custom_call.1']
    #allocation5 [shape = 'u8[2359296]{0}', space=vmem, size = 0x240000, scoped, tag = 'input window, operand 1, single buffered']
    #allocation6 [shape = 's32[1]{0}', space=sflag, size = 0x4, scoped, tag = 'scoped memory for tpu_custom_call.1']
    #allocation7 [shape = 'u8[2048]{0}', space=vmem, size = 0x800, scoped, tag = 'input window, operand 2, single buffered']
    #allocation8 [shape = 'u8[524288]{0}', space=vmem, size = 0x80000, scoped, tag = 'input window, operand 3, single buffered']
    #allocation9 [shape = 's32[1]{0}', space=sflag, size = 0x4, scoped, tag = 'scoped memory for tpu_custom_call.1']
    #allocation10 [shape = 'u8[1024]{0}', space=vmem, size = 0x400, scoped, tag = 'input window, operand 4, single buffered']
    #allocation11 [shape = 'u8[131072]{0}', space=vmem, size = 0x20000, scoped, tag = 'input window, operand 5, single buffered']
    #allocation12 [shape = 's32[1]{0}', space=sflag, size = 0x4, scoped, tag = 'scoped memory for tpu_custom_call.1']
    #allocation13 [shape = 'u8[512]{0}', space=vmem, size = 0x400, scoped, tag = 'input window, operand 6, single buffered']
    #allocation14 [shape = 'u8[4096]{0}', space=vmem, size = 0x1000, scoped, tag = 'output window, operand 0, single buffered']
    %12 = vsyncpa [#allocation3], 0
    %13 = vsyncpa [#allocation6], 0
    %14 = vsyncpa [#allocation9], 0
    %15 = vsyncpa [#allocation12], 0
    %16 = vsyncpa [#allocation4], 0
    // Predicated region
    $region2: #{tpu_custom_call.1} parent=1 // pred_check
      _
    $region3: #{tpu_custom_call.1} parent=1 // pred_check_branch
      %18 = sbr.rel (0) target = $region5
    $region4: #{tpu_custom_call.1} parent=1 // pred_region
      %20 = vsyncadd [#allocation3], 0
      %s22 = sshll.u32 %s0, 4
      %s23 = int_to_ptr.hbm [resolvable:$true] %s22
      %s24 = sshll.u32 [#allocation2], 4
      %s25 = int_to_ptr.vmem [resolvable:$true] %s24
      %27 = dma.hbm_to_vmem [thread:$0]  %s23, 1152, %s25, [#allocation3]
    $region5: #{tpu_custom_call.1} parent=1 // pred_fallthru
      _
    // Predicated region
    $region6: #{tpu_custom_call.1} parent=1 // pred_check
      _
    $region7: #{tpu_custom_call.1} parent=1 // pred_check_branch
      %29 = sbr.rel (0) target = $region9
    $region8: #{tpu_custom_call.1} parent=1 // pred_region
      %31 = vsyncadd [#allocation6], 0
      %s32 = sshll.u32 %s1, 4
      %s33 = int_to_ptr.hbm [resolvable:$true] %s32
      %s34 = sshll.u32 [#allocation5], 4
      %s35 = int_to_ptr.vmem [resolvable:$true] %s34
      %40 = dma.hbm_to_vmem [thread:$0]  %s33, 73728, %s35, [#allocation6], 512, 512, 32
    $region9: #{tpu_custom_call.1} parent=1 // pred_fallthru
      _
    // Predicated region
    $region10: #{tpu_custom_call.1} parent=1 // pred_check
      _
    $region11: #{tpu_custom_call.1} parent=1 // pred_check_branch
      %42 = sbr.rel (0) target = $region13
    $region12: #{tpu_custom_call.1} parent=1 // pred_region
      %44 = vsyncadd [#allocation6], 0
      %s46 = sshll.u32 %s2, 4
      %s47 = int_to_ptr.hbm [resolvable:$true] %s46
      %s48 = sshll.u32 [#allocation7], 4
      %s49 = int_to_ptr.vmem [resolvable:$true] %s48
      %51 = dma.hbm_to_vmem [thread:$0]  %s47, 64, %s49, [#allocation6]
    $region13: #{tpu_custom_call.1} parent=1 // pred_fallthru
      _
    // Predicated region
    $region14: #{tpu_custom_call.1} parent=1 // pred_check
      _
    $region15: #{tpu_custom_call.1} parent=1 // pred_check_branch
      %53 = sbr.rel (0) target = $region17
    $region16: #{tpu_custom_call.1} parent=1 // pred_region
      %55 = vsyncadd [#allocation9], 0
      %s56 = sshll.u32 %s3, 4
      %s57 = int_to_ptr.hbm [resolvable:$true] %s56
      %s58 = sshll.u32 [#allocation8], 4
      %s59 = int_to_ptr.vmem [resolvable:$true] %s58
      %64 = dma.hbm_to_vmem [thread:$0]  %s57, 16384, %s59, [#allocation9], 256, 256, 16
    $region17: #{tpu_custom_call.1} parent=1 // pred_fallthru
      _
    // Predicated region
    $region18: #{tpu_custom_call.1} parent=1 // pred_check
      _
    $region19: #{tpu_custom_call.1} parent=1 // pred_check_branch
      %66 = sbr.rel (0) target = $region21
    $region20: #{tpu_custom_call.1} parent=1 // pred_region
      %68 = vsyncadd [#allocation9], 0
      %s70 = sshll.u32 %s4, 4
      %s71 = int_to_ptr.hbm [resolvable:$true] %s70
      %s72 = sshll.u32 [#allocation10], 4
      %s73 = int_to_ptr.vmem [resolvable:$true] %s72
      %75 = dma.hbm_to_vmem [thread:$0]  %s71, 32, %s73, [#allocation9]
    $region21: #{tpu_custom_call.1} parent=1 // pred_fallthru
      _
    // Predicated region
    $region22: #{tpu_custom_call.1} parent=1 // pred_check
      _
    $region23: #{tpu_custom_call.1} parent=1 // pred_check_branch
      %77 = sbr.rel (0) target = $region25
    $region24: #{tpu_custom_call.1} parent=1 // pred_region
      %79 = vsyncadd [#allocation12], 0
      %s80 = sshll.u32 %s5, 4
      %s81 = int_to_ptr.hbm [resolvable:$true] %s80
      %s82 = sshll.u32 [#allocation11], 4
      %s83 = int_to_ptr.vmem [resolvable:$true] %s82
      %88 = dma.hbm_to_vmem [thread:$0]  %s81, 4096, %s83, [#allocation12], 128, 128, 8
    $region25: #{tpu_custom_call.1} parent=1 // pred_fallthru
      _
    // Predicated region
    $region26: #{tpu_custom_call.1} parent=1 // pred_check
      _
    $region27: #{tpu_custom_call.1} parent=1 // pred_check_branch
      %90 = sbr.rel (0) target = $region29
    $region28: #{tpu_custom_call.1} parent=1 // pred_region
      %92 = vsyncadd [#allocation12], 0
      %s94 = sshll.u32 %s6, 4
      %s95 = int_to_ptr.hbm [resolvable:$true] %s94
      %s96 = sshll.u32 [#allocation13], 4
      %s97 = int_to_ptr.vmem [resolvable:$true] %s96
      %99 = dma.hbm_to_vmem [thread:$0]  %s95, 16, %s97, [#allocation12]
    $region29: #{tpu_custom_call.1} parent=1 // pred_fallthru
      _
    // Predicated region
    $region30: #{tpu_custom_call.1} parent=1 // pred_check
      _
    $region31: #{tpu_custom_call.1} parent=1 // pred_check_branch
      %101 = sbr.rel (0) target = $region33
    $region32: #{tpu_custom_call.1} parent=1 // pred_region
      %103 = dma.done [#allocation3], 1152
    $region33: #{tpu_custom_call.1} parent=1 // pred_fallthru
      _
    // Predicated region
    $region34: #{tpu_custom_call.1} parent=1 // pred_check
      _
    $region35: #{tpu_custom_call.1} parent=1 // pred_check_branch
      %105 = sbr.rel (0) target = $region37
    $region36: #{tpu_custom_call.1} parent=1 // pred_region
      %107 = dma.done [#allocation6], 73728
    $region37: #{tpu_custom_call.1} parent=1 // pred_fallthru
      _
    // Predicated region
    $region38: #{tpu_custom_call.1} parent=1 // pred_check
      _
    $region39: #{tpu_custom_call.1} parent=1 // pred_check_branch
      %109 = sbr.rel (0) target = $region41
    $region40: #{tpu_custom_call.1} parent=1 // pred_region
      %111 = dma.done [#allocation6], 64
    $region41: #{tpu_custom_call.1} parent=1 // pred_fallthru
      _
    // Predicated region
    $region42: #{tpu_custom_call.1} parent=1 // pred_check
      _
    $region43: #{tpu_custom_call.1} parent=1 // pred_check_branch
      %113 = sbr.rel (0) target = $region45
    $region44: #{tpu_custom_call.1} parent=1 // pred_region
      %115 = dma.done [#allocation9], 16384
    $region45: #{tpu_custom_call.1} parent=1 // pred_fallthru
      _
    // Predicated region
    $region46: #{tpu_custom_call.1} parent=1 // pred_check
      _
    $region47: #{tpu_custom_call.1} parent=1 // pred_check_branch
      %117 = sbr.rel (0) target = $region49
    $region48: #{tpu_custom_call.1} parent=1 // pred_region
      %119 = dma.done [#allocation9], 32
    $region49: #{tpu_custom_call.1} parent=1 // pred_fallthru
      _
    // Predicated region
    $region50: #{tpu_custom_call.1} parent=1 // pred_check
      _
    $region51: #{tpu_custom_call.1} parent=1 // pred_check_branch
      %121 = sbr.rel (0) target = $region53
    $region52: #{tpu_custom_call.1} parent=1 // pred_region
      %123 = dma.done [#allocation12], 4096
    $region53: #{tpu_custom_call.1} parent=1 // pred_fallthru
      _
    // Predicated region
    $region54: #{tpu_custom_call.1} parent=1 // pred_check
      _
    $region55: #{tpu_custom_call.1} parent=1 // pred_check_branch
      %125 = sbr.rel (0) target = $region57
    $region56: #{tpu_custom_call.1} parent=1 // pred_region
      %127 = dma.done [#allocation12], 16
    $region57: #{tpu_custom_call.1} parent=1 // pred_fallthru
      _
    %v128 = vld [vmem:[#allocation2] sm:$0xff]
    %v129 = vld [vmem:[#allocation2 + $0x8] sm:$0xff]
    %v130 = vld [vmem:[#allocation2 + $0x10] sm:$0xff]
    %v131 = vld [vmem:[#allocation2 + $0x18] sm:$0xff]
    %v132 = vld [vmem:[#allocation2 + $0x20] sm:$0xff]
    %v133 = vld [vmem:[#allocation2 + $0x28] sm:$0xff]
    %v134 = vld [vmem:[#allocation2 + $0x30] sm:$0xff]
    %v135 = vld [vmem:[#allocation2 + $0x38] sm:$0xff]
    %v136 = vld [vmem:[#allocation2 + $0x40] sm:$0xff]
    %v137 = vld [vmem:[#allocation5] sm:$0xff]
    %v138 = vld [vmem:[#allocation5 + $0x8] sm:$0xff]
    %v139 = vld [vmem:[#allocation5 + $0x10] sm:$0xff]
    %v140 = vld [vmem:[#allocation5 + $0x18] sm:$0xff]
    %v141 = vld [vmem:[#allocation5 + $0x20] sm:$0xff]
    %v142 = vld [vmem:[#allocation5 + $0x28] sm:$0xff]
    %v143 = vld [vmem:[#allocation5 + $0x30] sm:$0xff]
    %v144 = vld [vmem:[#allocation5 + $0x38] sm:$0xff]
    %v145 = vld [vmem:[#allocation5 + $0x40] sm:$0xff]
    %v146 = vld [vmem:[#allocation5 + $0x48] sm:$0xff]
    %v147 = vld [vmem:[#allocation5 + $0x50] sm:$0xff]
    %v148 = vld [vmem:[#allocation5 + $0x58] sm:$0xff]
    %v149 = vld [vmem:[#allocation5 + $0x60] sm:$0xff]
    %v150 = vld [vmem:[#allocation5 + $0x68] sm:$0xff]
    %v151 = vld [vmem:[#allocation5 + $0x70] sm:$0xff]
    %v152 = vld [vmem:[#allocation5 + $0x78] sm:$0xff]
    %v153 = vld [vmem:[#allocation5 + $0x80] sm:$0xff]
    %v154 = vld [vmem:[#allocation5 + $0x88] sm:$0xff]
    %v155 = vld [vmem:[#allocation5 + $0x90] sm:$0xff]
    %v156 = vld [vmem:[#allocation5 + $0x98] sm:$0xff]
    %v157 = vld [vmem:[#allocation5 + $0xa0] sm:$0xff]
    %v158 = vld [vmem:[#allocation5 + $0xa8] sm:$0xff]
    %v159 = vld [vmem:[#allocation5 + $0xb0] sm:$0xff]
    %v160 = vld [vmem:[#allocation5 + $0xb8] sm:$0xff]
    %v161 = vld [vmem:[#allocation5 + $0xc0] sm:$0xff]
    %v162 = vld [vmem:[#allocation5 + $0xc8] sm:$0xff]
    %v163 = vld [vmem:[#allocation5 + $0xd0] sm:$0xff]
    %v164 = vld [vmem:[#allocation5 + $0xd8] sm:$0xff]
    %v165 = vld [vmem:[#allocation5 + $0xe0] sm:$0xff]
    %v166 = vld [vmem:[#allocation5 + $0xe8] sm:$0xff]
    %v167 = vld [vmem:[#allocation5 + $0xf0] sm:$0xff]
    %v168 = vld [vmem:[#allocation5 + $0xf8] sm:$0xff]
    %v169 = vld [vmem:[#allocation5 + $0x100] sm:$0xff]
    %v170 = vld [vmem:[#allocation5 + $0x108] sm:$0xff]
    %v171 = vld [vmem:[#allocation5 + $0x110] sm:$0xff]
    %v172 = vld [vmem:[#allocation5 + $0x118] sm:$0xff]
    %v173 = vld [vmem:[#allocation5 + $0x120] sm:$0xff]
    %v174 = vld [vmem:[#allocation5 + $0x128] sm:$0xff]
    %v175 = vld [vmem:[#allocation5 + $0x130] sm:$0xff]
    %v176 = vld [vmem:[#allocation5 + $0x138] sm:$0xff]
    %v177 = vld [vmem:[#allocation5 + $0x140] sm:$0xff]
    %v178 = vld [vmem:[#allocation5 + $0x148] sm:$0xff]
    %v179 = vld [vmem:[#allocation5 + $0x150] sm:$0xff]
    %v180 = vld [vmem:[#allocation5 + $0x158] sm:$0xff]
    %v181 = vld [vmem:[#allocation5 + $0x160] sm:$0xff]
    %v182 = vld [vmem:[#allocation5 + $0x168] sm:$0xff]
    %v183 = vld [vmem:[#allocation5 + $0x170] sm:$0xff]
    %v184 = vld [vmem:[#allocation5 + $0x178] sm:$0xff]
    %v185 = vld [vmem:[#allocation5 + $0x180] sm:$0xff]
    %v186 = vld [vmem:[#allocation5 + $0x188] sm:$0xff]
    %v187 = vld [vmem:[#allocation5 + $0x190] sm:$0xff]
    %v188 = vld [vmem:[#allocation5 + $0x198] sm:$0xff]
    %v189 = vld [vmem:[#allocation5 + $0x1a0] sm:$0xff]
    %v190 = vld [vmem:[#allocation5 + $0x1a8] sm:$0xff]
    %v191 = vld [vmem:[#allocation5 + $0x1b0] sm:$0xff]
    %v192 = vld [vmem:[#allocation5 + $0x1b8] sm:$0xff]
    %v193 = vld [vmem:[#allocation5 + $0x1c0] sm:$0xff]
    %v194 = vld [vmem:[#allocation5 + $0x1c8] sm:$0xff]
    %v195 = vld [vmem:[#allocation5 + $0x1d0] sm:$0xff]
    %v196 = vld [vmem:[#allocation5 + $0x1d8] sm:$0xff]
    %v197 = vld [vmem:[#allocation5 + $0x1e0] sm:$0xff]
    %v198 = vld [vmem:[#allocation5 + $0x1e8] sm:$0xff]
    %v199 = vld [vmem:[#allocation5 + $0x1f0] sm:$0xff]
    %v200 = vld [vmem:[#allocation5 + $0x1f8] sm:$0xff]
    %v201 = vld [vmem:[#allocation5 + $0x200] sm:$0xff]
    %v202 = vld [vmem:[#allocation5 + $0x208] sm:$0xff]
    %v203 = vld [vmem:[#allocation5 + $0x210] sm:$0xff]
    %v204 = vld [vmem:[#allocation5 + $0x218] sm:$0xff]
    %v205 = vld [vmem:[#allocation5 + $0x220] sm:$0xff]
    %v206 = vld [vmem:[#allocation5 + $0x228] sm:$0xff]
    %v207 = vld [vmem:[#allocation5 + $0x230] sm:$0xff]
    %v208 = vld [vmem:[#allocation5 + $0x238] sm:$0xff]
    %v209 = vld [vmem:[#allocation5 + $0x240] sm:$0xff]
    %v210 = vld [vmem:[#allocation5 + $0x248] sm:$0xff]
    %v211 = vld [vmem:[#allocation5 + $0x250] sm:$0xff]
    %v212 = vld [vmem:[#allocation5 + $0x258] sm:$0xff]
    %v213 = vld [vmem:[#allocation5 + $0x260] sm:$0xff]
    %v214 = vld [vmem:[#allocation5 + $0x268] sm:$0xff]
    %v215 = vld [vmem:[#allocation5 + $0x270] sm:$0xff]
    %v216 = vld [vmem:[#allocation5 + $0x278] sm:$0xff]
    %v217 = vld [vmem:[#allocation5 + $0x280] sm:$0xff]
    %v218 = vld [vmem:[#allocation5 + $0x288] sm:$0xff]
    %v219 = vld [vmem:[#allocation5 + $0x290] sm:$0xff]
    %v220 = vld [vmem:[#allocation5 + $0x298] sm:$0xff]
    %v221 = vld [vmem:[#allocation5 + $0x2a0] sm:$0xff]
    %v222 = vld [vmem:[#allocation5 + $0x2a8] sm:$0xff]
    %v223 = vld [vmem:[#allocation5 + $0x2b0] sm:$0xff]
    %v224 = vld [vmem:[#allocation5 + $0x2b8] sm:$0xff]
    %v225 = vld [vmem:[#allocation5 + $0x2c0] sm:$0xff]
    %v226 = vld [vmem:[#allocation5 + $0x2c8] sm:$0xff]
    %v227 = vld [vmem:[#allocation5 + $0x2d0] sm:$0xff]
    %v228 = vld [vmem:[#allocation5 + $0x2d8] sm:$0xff]
    %v229 = vld [vmem:[#allocation5 + $0x2e0] sm:$0xff]
    %v230 = vld [vmem:[#allocation5 + $0x2e8] sm:$0xff]
    %v231 = vld [vmem:[#allocation5 + $0x2f0] sm:$0xff]
    %v232 = vld [vmem:[#allocation5 + $0x2f8] sm:$0xff]
    %v233 = vld [vmem:[#allocation5 + $0x300] sm:$0xff]
    %v234 = vld [vmem:[#allocation5 + $0x308] sm:$0xff]
    %v235 = vld [vmem:[#allocation5 + $0x310] sm:$0xff]
    %v236 = vld [vmem:[#allocation5 + $0x318] sm:$0xff]
    %v237 = vld [vmem:[#allocation5 + $0x320] sm:$0xff]
    %v238 = vld [vmem:[#allocation5 + $0x328] sm:$0xff]
    %v239 = vld [vmem:[#allocation5 + $0x330] sm:$0xff]
    %v240 = vld [vmem:[#allocation5 + $0x338] sm:$0xff]
    %v241 = vld [vmem:[#allocation5 + $0x340] sm:$0xff]
    %v242 = vld [vmem:[#allocation5 + $0x348] sm:$0xff]
    %v243 = vld [vmem:[#allocation5 + $0x350] sm:$0xff]
    %v244 = vld [vmem:[#allocation5 + $0x358] sm:$0xff]
    %v245 = vld [vmem:[#allocation5 + $0x360] sm:$0xff]
    %v246 = vld [vmem:[#allocation5 + $0x368] sm:$0xff]
    %v247 = vld [vmem:[#allocation5 + $0x370] sm:$0xff]
    %v248 = vld [vmem:[#allocation5 + $0x378] sm:$0xff]
    %v249 = vld [vmem:[#allocation5 + $0x380] sm:$0xff]
    %v250 = vld [vmem:[#allocation5 + $0x388] sm:$0xff]
    %v251 = vld [vmem:[#allocation5 + $0x390] sm:$0xff]
    %v252 = vld [vmem:[#allocation5 + $0x398] sm:$0xff]
    %v253 = vld [vmem:[#allocation5 + $0x3a0] sm:$0xff]
    %v254 = vld [vmem:[#allocation5 + $0x3a8] sm:$0xff]
    %v255 = vld [vmem:[#allocation5 + $0x3b0] sm:$0xff]
    %v256 = vld [vmem:[#allocation5 + $0x3b8] sm:$0xff]
    %v257 = vld [vmem:[#allocation5 + $0x3c0] sm:$0xff]
    %v258 = vld [vmem:[#allocation5 + $0x3c8] sm:$0xff]
    %v259 = vld [vmem:[#allocation5 + $0x3d0] sm:$0xff]
    %v260 = vld [vmem:[#allocation5 + $0x3d8] sm:$0xff]
    %v261 = vld [vmem:[#allocation5 + $0x3e0] sm:$0xff]
    %v262 = vld [vmem:[#allocation5 + $0x3e8] sm:$0xff]
    %v263 = vld [vmem:[#allocation5 + $0x3f0] sm:$0xff]
    %v264 = vld [vmem:[#allocation5 + $0x3f8] sm:$0xff]
    %v265 = vld [vmem:[#allocation5 + $0x400] sm:$0xff]
    %v266 = vld [vmem:[#allocation5 + $0x408] sm:$0xff]
    %v267 = vld [vmem:[#allocation5 + $0x410] sm:$0xff]
    %v268 = vld [vmem:[#allocation5 + $0x418] sm:$0xff]
    %v269 = vld [vmem:[#allocation5 + $0x420] sm:$0xff]
    %v270 = vld [vmem:[#allocation5 + $0x428] sm:$0xff]
    %v271 = vld [vmem:[#allocation5 + $0x430] sm:$0xff]
    %v272 = vld [vmem:[#allocation5 + $0x438] sm:$0xff]
    %v273 = vld [vmem:[#allocation5 + $0x440] sm:$0xff]
    %v274 = vld [vmem:[#allocation5 + $0x448] sm:$0xff]
    %v275 = vld [vmem:[#allocation5 + $0x450] sm:$0xff]
    %v276 = vld [vmem:[#allocation5 + $0x458] sm:$0xff]
    %v277 = vld [vmem:[#allocation5 + $0x460] sm:$0xff]
    %v278 = vld [vmem:[#allocation5 + $0x468] sm:$0xff]
    %v279 = vld [vmem:[#allocation5 + $0x470] sm:$0xff]
    %v280 = vld [vmem:[#allocation5 + $0x478] sm:$0xff]
    %v281 = vld [vmem:[#allocation5 + $0x480] sm:$0xff]
    %v282 = vld [vmem:[#allocation5 + $0x488] sm:$0xff]
    %v283 = vld [vmem:[#allocation5 + $0x490] sm:$0xff]
    %v284 = vld [vmem:[#allocation5 + $0x498] sm:$0xff]
    %v285 = vld [vmem:[#allocation5 + $0x4a0] sm:$0xff]
    %v286 = vld [vmem:[#allocation5 + $0x4a8] sm:$0xff]
    %v287 = vld [vmem:[#allocation5 + $0x4b0] sm:$0xff]
    %v288 = vld [vmem:[#allocation5 + $0x4b8] sm:$0xff]
    %v289 = vld [vmem:[#allocation5 + $0x4c0] sm:$0xff]
    %v290 = vld [vmem:[#allocation5 + $0x4c8] sm:$0xff]
    %v291 = vld [vmem:[#allocation5 + $0x4d0] sm:$0xff]
    %v292 = vld [vmem:[#allocation5 + $0x4d8] sm:$0xff]
    %v293 = vld [vmem:[#allocation5 + $0x4e0] sm:$0xff]
    %v294 = vld [vmem:[#allocation5 + $0x4e8] sm:$0xff]
    %v295 = vld [vmem:[#allocation5 + $0x4f0] sm:$0xff]
    %v296 = vld [vmem:[#allocation5 + $0x4f8] sm:$0xff]
    %v297 = vld [vmem:[#allocation5 + $0x500] sm:$0xff]
    %v298 = vld [vmem:[#allocation5 + $0x508] sm:$0xff]
    %v299 = vld [vmem:[#allocation5 + $0x510] sm:$0xff]
    %v300 = vld [vmem:[#allocation5 + $0x518] sm:$0xff]
    %v301 = vld [vmem:[#allocation5 + $0x520] sm:$0xff]
    %v302 = vld [vmem:[#allocation5 + $0x528] sm:$0xff]
    %v303 = vld [vmem:[#allocation5 + $0x530] sm:$0xff]
    %v304 = vld [vmem:[#allocation5 + $0x538] sm:$0xff]
    %v305 = vld [vmem:[#allocation5 + $0x540] sm:$0xff]
    %v306 = vld [vmem:[#allocation5 + $0x548] sm:$0xff]
    %v307 = vld [vmem:[#allocation5 + $0x550] sm:$0xff]
    %v308 = vld [vmem:[#allocation5 + $0x558] sm:$0xff]
    %v309 = vld [vmem:[#allocation5 + $0x560] sm:$0xff]
    %v310 = vld [vmem:[#allocation5 + $0x568] sm:$0xff]
    %v311 = vld [vmem:[#allocation5 + $0x570] sm:$0xff]
    %v312 = vld [vmem:[#allocation5 + $0x578] sm:$0xff]
    %v313 = vld [vmem:[#allocation5 + $0x580] sm:$0xff]
    %v314 = vld [vmem:[#allocation5 + $0x588] sm:$0xff]
    %v315 = vld [vmem:[#allocation5 + $0x590] sm:$0xff]
    %v316 = vld [vmem:[#allocation5 + $0x598] sm:$0xff]
    %v317 = vld [vmem:[#allocation5 + $0x5a0] sm:$0xff]
    %v318 = vld [vmem:[#allocation5 + $0x5a8] sm:$0xff]
    %v319 = vld [vmem:[#allocation5 + $0x5b0] sm:$0xff]
    %v320 = vld [vmem:[#allocation5 + $0x5b8] sm:$0xff]
    %v321 = vld [vmem:[#allocation5 + $0x5c0] sm:$0xff]
    %v322 = vld [vmem:[#allocation5 + $0x5c8] sm:$0xff]
    %v323 = vld [vmem:[#allocation5 + $0x5d0] sm:$0xff]
    %v324 = vld [vmem:[#allocation5 + $0x5d8] sm:$0xff]
    %v325 = vld [vmem:[#allocation5 + $0x5e0] sm:$0xff]
    %v326 = vld [vmem:[#allocation5 + $0x5e8] sm:$0xff]
    %v327 = vld [vmem:[#allocation5 + $0x5f0] sm:$0xff]
    %v328 = vld [vmem:[#allocation5 + $0x5f8] sm:$0xff]
    %v329 = vld [vmem:[#allocation5 + $0x600] sm:$0xff]
    %v330 = vld [vmem:[#allocation5 + $0x608] sm:$0xff]
    %v331 = vld [vmem:[#allocation5 + $0x610] sm:$0xff]
    %v332 = vld [vmem:[#allocation5 + $0x618] sm:$0xff]
    %v333 = vld [vmem:[#allocation5 + $0x620] sm:$0xff]
    %v334 = vld [vmem:[#allocation5 + $0x628] sm:$0xff]
    %v335 = vld [vmem:[#allocation5 + $0x630] sm:$0xff]
    %v336 = vld [vmem:[#allocation5 + $0x638] sm:$0xff]
    %v337 = vld [vmem:[#allocation5 + $0x640] sm:$0xff]
    %v338 = vld [vmem:[#allocation5 + $0x648] sm:$0xff]
    %v339 = vld [vmem:[#allocation5 + $0x650] sm:$0xff]
    %v340 = vld [vmem:[#allocation5 + $0x658] sm:$0xff]
    %v341 = vld [vmem:[#allocation5 + $0x660] sm:$0xff]
    %v342 = vld [vmem:[#allocation5 + $0x668] sm:$0xff]
    %v343 = vld [vmem:[#allocation5 + $0x670] sm:$0xff]
    %v344 = vld [vmem:[#allocation5 + $0x678] sm:$0xff]
    %v345 = vld [vmem:[#allocation5 + $0x680] sm:$0xff]
    %v346 = vld [vmem:[#allocation5 + $0x688] sm:$0xff]
    %v347 = vld [vmem:[#allocation5 + $0x690] sm:$0xff]
    %v348 = vld [vmem:[#allocation5 + $0x698] sm:$0xff]
    %v349 = vld [vmem:[#allocation5 + $0x6a0] sm:$0xff]
    %v350 = vld [vmem:[#allocation5 + $0x6a8] sm:$0xff]
    %v351 = vld [vmem:[#allocation5 + $0x6b0] sm:$0xff]
    %v352 = vld [vmem:[#allocation5 + $0x6b8] sm:$0xff]
    %v353 = vld [vmem:[#allocation5 + $0x6c0] sm:$0xff]
    %v354 = vld [vmem:[#allocation5 + $0x6c8] sm:$0xff]
    %v355 = vld [vmem:[#allocation5 + $0x6d0] sm:$0xff]
    %v356 = vld [vmem:[#allocation5 + $0x6d8] sm:$0xff]
    %v357 = vld [vmem:[#allocation5 + $0x6e0] sm:$0xff]
    %v358 = vld [vmem:[#allocation5 + $0x6e8] sm:$0xff]
    %v359 = vld [vmem:[#allocation5 + $0x6f0] sm:$0xff]
    %v360 = vld [vmem:[#allocation5 + $0x6f8] sm:$0xff]
    %v361 = vld [vmem:[#allocation5 + $0x700] sm:$0xff]
    %v362 = vld [vmem:[#allocation5 + $0x708] sm:$0xff]
    %v363 = vld [vmem:[#allocation5 + $0x710] sm:$0xff]
    %v364 = vld [vmem:[#allocation5 + $0x718] sm:$0xff]
    %v365 = vld [vmem:[#allocation5 + $0x720] sm:$0xff]
    %v366 = vld [vmem:[#allocation5 + $0x728] sm:$0xff]
    %v367 = vld [vmem:[#allocation5 + $0x730] sm:$0xff]
    %v368 = vld [vmem:[#allocation5 + $0x738] sm:$0xff]
    %v369 = vld [vmem:[#allocation5 + $0x740] sm:$0xff]
    %v370 = vld [vmem:[#allocation5 + $0x748] sm:$0xff]
    %v371 = vld [vmem:[#allocation5 + $0x750] sm:$0xff]
    %v372 = vld [vmem:[#allocation5 + $0x758] sm:$0xff]
    %v373 = vld [vmem:[#allocation5 + $0x760] sm:$0xff]
    %v374 = vld [vmem:[#allocation5 + $0x768] sm:$0xff]
    %v375 = vld [vmem:[#allocation5 + $0x770] sm:$0xff]
    %v376 = vld [vmem:[#allocation5 + $0x778] sm:$0xff]
    %v377 = vld [vmem:[#allocation5 + $0x780] sm:$0xff]
    %v378 = vld [vmem:[#allocation5 + $0x788] sm:$0xff]
    %v379 = vld [vmem:[#allocation5 + $0x790] sm:$0xff]
    %v380 = vld [vmem:[#allocation5 + $0x798] sm:$0xff]
    %v381 = vld [vmem:[#allocation5 + $0x7a0] sm:$0xff]
    %v382 = vld [vmem:[#allocation5 + $0x7a8] sm:$0xff]
    %v383 = vld [vmem:[#allocation5 + $0x7b0] sm:$0xff]
    %v384 = vld [vmem:[#allocation5 + $0x7b8] sm:$0xff]
    %v385 = vld [vmem:[#allocation5 + $0x7c0] sm:$0xff]
    %v386 = vld [vmem:[#allocation5 + $0x7c8] sm:$0xff]
    %v387 = vld [vmem:[#allocation5 + $0x7d0] sm:$0xff]
    %v388 = vld [vmem:[#allocation5 + $0x7d8] sm:$0xff]
    %v389 = vld [vmem:[#allocation5 + $0x7e0] sm:$0xff]
    %v390 = vld [vmem:[#allocation5 + $0x7e8] sm:$0xff]
    %v391 = vld [vmem:[#allocation5 + $0x7f0] sm:$0xff]
    %v392 = vld [vmem:[#allocation5 + $0x7f8] sm:$0xff]
    %v393 = vld [vmem:[#allocation5 + $0x800] sm:$0xff]
    %v394 = vld [vmem:[#allocation5 + $0x808] sm:$0xff]
    %v395 = vld [vmem:[#allocation5 + $0x810] sm:$0xff]
    %v396 = vld [vmem:[#allocation5 + $0x818] sm:$0xff]
    %v397 = vld [vmem:[#allocation5 + $0x820] sm:$0xff]
    %v398 = vld [vmem:[#allocation5 + $0x828] sm:$0xff]
    %v399 = vld [vmem:[#allocation5 + $0x830] sm:$0xff]
    %v400 = vld [vmem:[#allocation5 + $0x838] sm:$0xff]
    %v401 = vld [vmem:[#allocation5 + $0x840] sm:$0xff]
    %v402 = vld [vmem:[#allocation5 + $0x848] sm:$0xff]
    %v403 = vld [vmem:[#allocation5 + $0x850] sm:$0xff]
    %v404 = vld [vmem:[#allocation5 + $0x858] sm:$0xff]
    %v405 = vld [vmem:[#allocation5 + $0x860] sm:$0xff]
    %v406 = vld [vmem:[#allocation5 + $0x868] sm:$0xff]
    %v407 = vld [vmem:[#allocation5 + $0x870] sm:$0xff]
    %v408 = vld [vmem:[#allocation5 + $0x878] sm:$0xff]
    %v409 = vld [vmem:[#allocation5 + $0x880] sm:$0xff]
    %v410 = vld [vmem:[#allocation5 + $0x888] sm:$0xff]
    %v411 = vld [vmem:[#allocation5 + $0x890] sm:$0xff]
    %v412 = vld [vmem:[#allocation5 + $0x898] sm:$0xff]
    %v413 = vld [vmem:[#allocation5 + $0x8a0] sm:$0xff]
    %v414 = vld [vmem:[#allocation5 + $0x8a8] sm:$0xff]
    %v415 = vld [vmem:[#allocation5 + $0x8b0] sm:$0xff]
    %v416 = vld [vmem:[#allocation5 + $0x8b8] sm:$0xff]
    %v417 = vld [vmem:[#allocation5 + $0x8c0] sm:$0xff]
    %v418 = vld [vmem:[#allocation5 + $0x8c8] sm:$0xff]
    %v419 = vld [vmem:[#allocation5 + $0x8d0] sm:$0xff]
    %v420 = vld [vmem:[#allocation5 + $0x8d8] sm:$0xff]
    %v421 = vld [vmem:[#allocation5 + $0x8e0] sm:$0xff]
    %v422 = vld [vmem:[#allocation5 + $0x8e8] sm:$0xff]
    %v423 = vld [vmem:[#allocation5 + $0x8f0] sm:$0xff]
    %v424 = vld [vmem:[#allocation5 + $0x8f8] sm:$0xff]
    %v425 = vld [vmem:[#allocation5 + $0x900] sm:$0xff]
    %v426 = vld [vmem:[#allocation5 + $0x908] sm:$0xff]
    %v427 = vld [vmem:[#allocation5 + $0x910] sm:$0xff]
    %v428 = vld [vmem:[#allocation5 + $0x918] sm:$0xff]
    %v429 = vld [vmem:[#allocation5 + $0x920] sm:$0xff]
    %v430 = vld [vmem:[#allocation5 + $0x928] sm:$0xff]
    %v431 = vld [vmem:[#allocation5 + $0x930] sm:$0xff]
    %v432 = vld [vmem:[#allocation5 + $0x938] sm:$0xff]
    %v433 = vld [vmem:[#allocation5 + $0x940] sm:$0xff]
    %v434 = vld [vmem:[#allocation5 + $0x948] sm:$0xff]
    %v435 = vld [vmem:[#allocation5 + $0x950] sm:$0xff]
    %v436 = vld [vmem:[#allocation5 + $0x958] sm:$0xff]
    %v437 = vld [vmem:[#allocation5 + $0x960] sm:$0xff]
    %v438 = vld [vmem:[#allocation5 + $0x968] sm:$0xff]
    %v439 = vld [vmem:[#allocation5 + $0x970] sm:$0xff]
    %v440 = vld [vmem:[#allocation5 + $0x978] sm:$0xff]
    %v441 = vld [vmem:[#allocation5 + $0x980] sm:$0xff]
    %v442 = vld [vmem:[#allocation5 + $0x988] sm:$0xff]
    %v443 = vld [vmem:[#allocation5 + $0x990] sm:$0xff]
    %v444 = vld [vmem:[#allocation5 + $0x998] sm:$0xff]
    %v445 = vld [vmem:[#allocation5 + $0x9a0] sm:$0xff]
    %v446 = vld [vmem:[#allocation5 + $0x9a8] sm:$0xff]
    %v447 = vld [vmem:[#allocation5 + $0x9b0] sm:$0xff]
    %v448 = vld [vmem:[#allocation5 + $0x9b8] sm:$0xff]
    %v449 = vld [vmem:[#allocation5 + $0x9c0] sm:$0xff]
    %v450 = vld [vmem:[#allocation5 + $0x9c8] sm:$0xff]
    %v451 = vld [vmem:[#allocation5 + $0x9d0] sm:$0xff]
    %v452 = vld [vmem:[#allocation5 + $0x9d8] sm:$0xff]
    %v453 = vld [vmem:[#allocation5 + $0x9e0] sm:$0xff]
    %v454 = vld [vmem:[#allocation5 + $0x9e8] sm:$0xff]
    %v455 = vld [vmem:[#allocation5 + $0x9f0] sm:$0xff]
    %v456 = vld [vmem:[#allocation5 + $0x9f8] sm:$0xff]
    %v457 = vld [vmem:[#allocation5 + $0xa00] sm:$0xff]
    %v458 = vld [vmem:[#allocation5 + $0xa08] sm:$0xff]
    %v459 = vld [vmem:[#allocation5 + $0xa10] sm:$0xff]
    %v460 = vld [vmem:[#allocation5 + $0xa18] sm:$0xff]
    %v461 = vld [vmem:[#allocation5 + $0xa20] sm:$0xff]
    %v462 = vld [vmem:[#allocation5 + $0xa28] sm:$0xff]
    %v463 = vld [vmem:[#allocation5 + $0xa30] sm:$0xff]
    %v464 = vld [vmem:[#allocation5 + $0xa38] sm:$0xff]
    %v465 = vld [vmem:[#allocation5 + $0xa40] sm:$0xff]
    %v466 = vld [vmem:[#allocation5 + $0xa48] sm:$0xff]
    %v467 = vld [vmem:[#allocation5 + $0xa50] sm:$0xff]
    %v468 = vld [vmem:[#allocation5 + $0xa58] sm:$0xff]
    %v469 = vld [vmem:[#allocation5 + $0xa60] sm:$0xff]
    %v470 = vld [vmem:[#allocation5 + $0xa68] sm:$0xff]
    %v471 = vld [vmem:[#allocation5 + $0xa70] sm:$0xff]
    %v472 = vld [vmem:[#allocation5 + $0xa78] sm:$0xff]
    %v473 = vld [vmem:[#allocation5 + $0xa80] sm:$0xff]
    %v474 = vld [vmem:[#allocation5 + $0xa88] sm:$0xff]
    %v475 = vld [vmem:[#allocation5 + $0xa90] sm:$0xff]
    %v476 = vld [vmem:[#allocation5 + $0xa98] sm:$0xff]
    %v477 = vld [vmem:[#allocation5 + $0xaa0] sm:$0xff]
    %v478 = vld [vmem:[#allocation5 + $0xaa8] sm:$0xff]
    %v479 = vld [vmem:[#allocation5 + $0xab0] sm:$0xff]
    %v480 = vld [vmem:[#allocation5 + $0xab8] sm:$0xff]
    %v481 = vld [vmem:[#allocation5 + $0xac0] sm:$0xff]
    %v482 = vld [vmem:[#allocation5 + $0xac8] sm:$0xff]
    %v483 = vld [vmem:[#allocation5 + $0xad0] sm:$0xff]
    %v484 = vld [vmem:[#allocation5 + $0xad8] sm:$0xff]
    %v485 = vld [vmem:[#allocation5 + $0xae0] sm:$0xff]
    %v486 = vld [vmem:[#allocation5 + $0xae8] sm:$0xff]
    %v487 = vld [vmem:[#allocation5 + $0xaf0] sm:$0xff]
    %v488 = vld [vmem:[#allocation5 + $0xaf8] sm:$0xff]
    %v489 = vld [vmem:[#allocation5 + $0xb00] sm:$0xff]
    %v490 = vld [vmem:[#allocation5 + $0xb08] sm:$0xff]
    %v491 = vld [vmem:[#allocation5 + $0xb10] sm:$0xff]
    %v492 = vld [vmem:[#allocation5 + $0xb18] sm:$0xff]
    %v493 = vld [vmem:[#allocation5 + $0xb20] sm:$0xff]
    %v494 = vld [vmem:[#allocation5 + $0xb28] sm:$0xff]
    %v495 = vld [vmem:[#allocation5 + $0xb30] sm:$0xff]
    %v496 = vld [vmem:[#allocation5 + $0xb38] sm:$0xff]
    %v497 = vld [vmem:[#allocation5 + $0xb40] sm:$0xff]
    %v498 = vld [vmem:[#allocation5 + $0xb48] sm:$0xff]
    %v499 = vld [vmem:[#allocation5 + $0xb50] sm:$0xff]
    %v500 = vld [vmem:[#allocation5 + $0xb58] sm:$0xff]
    %v501 = vld [vmem:[#allocation5 + $0xb60] sm:$0xff]
    %v502 = vld [vmem:[#allocation5 + $0xb68] sm:$0xff]
    %v503 = vld [vmem:[#allocation5 + $0xb70] sm:$0xff]
    %v504 = vld [vmem:[#allocation5 + $0xb78] sm:$0xff]
    %v505 = vld [vmem:[#allocation5 + $0xb80] sm:$0xff]
    %v506 = vld [vmem:[#allocation5 + $0xb88] sm:$0xff]
    %v507 = vld [vmem:[#allocation5 + $0xb90] sm:$0xff]
    %v508 = vld [vmem:[#allocation5 + $0xb98] sm:$0xff]
    %v509 = vld [vmem:[#allocation5 + $0xba0] sm:$0xff]
    %v510 = vld [vmem:[#allocation5 + $0xba8] sm:$0xff]
    %v511 = vld [vmem:[#allocation5 + $0xbb0] sm:$0xff]
    %v512 = vld [vmem:[#allocation5 + $0xbb8] sm:$0xff]
    %v513 = vld [vmem:[#allocation5 + $0xbc0] sm:$0xff]
    %v514 = vld [vmem:[#allocation5 + $0xbc8] sm:$0xff]
    %v515 = vld [vmem:[#allocation5 + $0xbd0] sm:$0xff]
    %v516 = vld [vmem:[#allocation5 + $0xbd8] sm:$0xff]
    %v517 = vld [vmem:[#allocation5 + $0xbe0] sm:$0xff]
    %v518 = vld [vmem:[#allocation5 + $0xbe8] sm:$0xff]
    %v519 = vld [vmem:[#allocation5 + $0xbf0] sm:$0xff]
    %v520 = vld [vmem:[#allocation5 + $0xbf8] sm:$0xff]
    %v521 = vld [vmem:[#allocation5 + $0xc00] sm:$0xff]
    %v522 = vld [vmem:[#allocation5 + $0xc08] sm:$0xff]
    %v523 = vld [vmem:[#allocation5 + $0xc10] sm:$0xff]
    %v524 = vld [vmem:[#allocation5 + $0xc18] sm:$0xff]
    %v525 = vld [vmem:[#allocation5 + $0xc20] sm:$0xff]
    %v526 = vld [vmem:[#allocation5 + $0xc28] sm:$0xff]
    %v527 = vld [vmem:[#allocation5 + $0xc30] sm:$0xff]
    %v528 = vld [vmem:[#allocation5 + $0xc38] sm:$0xff]
    %v529 = vld [vmem:[#allocation5 + $0xc40] sm:$0xff]
    %v530 = vld [vmem:[#allocation5 + $0xc48] sm:$0xff]
    %v531 = vld [vmem:[#allocation5 + $0xc50] sm:$0xff]
    %v532 = vld [vmem:[#allocation5 + $0xc58] sm:$0xff]
    %v533 = vld [vmem:[#allocation5 + $0xc60] sm:$0xff]
    %v534 = vld [vmem:[#allocation5 + $0xc68] sm:$0xff]
    %v535 = vld [vmem:[#allocation5 + $0xc70] sm:$0xff]
    %v536 = vld [vmem:[#allocation5 + $0xc78] sm:$0xff]
    %v537 = vld [vmem:[#allocation5 + $0xc80] sm:$0xff]
    %v538 = vld [vmem:[#allocation5 + $0xc88] sm:$0xff]
    %v539 = vld [vmem:[#allocation5 + $0xc90] sm:$0xff]
    %v540 = vld [vmem:[#allocation5 + $0xc98] sm:$0xff]
    %v541 = vld [vmem:[#allocation5 + $0xca0] sm:$0xff]
    %v542 = vld [vmem:[#allocation5 + $0xca8] sm:$0xff]
    %v543 = vld [vmem:[#allocation5 + $0xcb0] sm:$0xff]
    %v544 = vld [vmem:[#allocation5 + $0xcb8] sm:$0xff]
    %v545 = vld [vmem:[#allocation5 + $0xcc0] sm:$0xff]
    %v546 = vld [vmem:[#allocation5 + $0xcc8] sm:$0xff]
    %v547 = vld [vmem:[#allocation5 + $0xcd0] sm:$0xff]
    %v548 = vld [vmem:[#allocation5 + $0xcd8] sm:$0xff]
    %v549 = vld [vmem:[#allocation5 + $0xce0] sm:$0xff]
    %v550 = vld [vmem:[#allocation5 + $0xce8] sm:$0xff]
    %v551 = vld [vmem:[#allocation5 + $0xcf0] sm:$0xff]
    %v552 = vld [vmem:[#allocation5 + $0xcf8] sm:$0xff]
    %v553 = vld [vmem:[#allocation5 + $0xd00] sm:$0xff]
    %v554 = vld [vmem:[#allocation5 + $0xd08] sm:$0xff]
    %v555 = vld [vmem:[#allocation5 + $0xd10] sm:$0xff]
    %v556 = vld [vmem:[#allocation5 + $0xd18] sm:$0xff]
    %v557 = vld [vmem:[#allocation5 + $0xd20] sm:$0xff]
    %v558 = vld [vmem:[#allocation5 + $0xd28] sm:$0xff]
    %v559 = vld [vmem:[#allocation5 + $0xd30] sm:$0xff]
    %v560 = vld [vmem:[#allocation5 + $0xd38] sm:$0xff]
    %v561 = vld [vmem:[#allocation5 + $0xd40] sm:$0xff]
    %v562 = vld [vmem:[#allocation5 + $0xd48] sm:$0xff]
    %v563 = vld [vmem:[#allocation5 + $0xd50] sm:$0xff]
    %v564 = vld [vmem:[#allocation5 + $0xd58] sm:$0xff]
    %v565 = vld [vmem:[#allocation5 + $0xd60] sm:$0xff]
    %v566 = vld [vmem:[#allocation5 + $0xd68] sm:$0xff]
    %v567 = vld [vmem:[#allocation5 + $0xd70] sm:$0xff]
    %v568 = vld [vmem:[#allocation5 + $0xd78] sm:$0xff]
    %v569 = vld [vmem:[#allocation5 + $0xd80] sm:$0xff]
    %v570 = vld [vmem:[#allocation5 + $0xd88] sm:$0xff]
    %v571 = vld [vmem:[#allocation5 + $0xd90] sm:$0xff]
    %v572 = vld [vmem:[#allocation5 + $0xd98] sm:$0xff]
    %v573 = vld [vmem:[#allocation5 + $0xda0] sm:$0xff]
    %v574 = vld [vmem:[#allocation5 + $0xda8] sm:$0xff]
    %v575 = vld [vmem:[#allocation5 + $0xdb0] sm:$0xff]
    %v576 = vld [vmem:[#allocation5 + $0xdb8] sm:$0xff]
    %v577 = vld [vmem:[#allocation5 + $0xdc0] sm:$0xff]
    %v578 = vld [vmem:[#allocation5 + $0xdc8] sm:$0xff]
    %v579 = vld [vmem:[#allocation5 + $0xdd0] sm:$0xff]
    %v580 = vld [vmem:[#allocation5 + $0xdd8] sm:$0xff]
    %v581 = vld [vmem:[#allocation5 + $0xde0] sm:$0xff]
    %v582 = vld [vmem:[#allocation5 + $0xde8] sm:$0xff]
    %v583 = vld [vmem:[#allocation5 + $0xdf0] sm:$0xff]
    %v584 = vld [vmem:[#allocation5 + $0xdf8] sm:$0xff]
    %v585 = vld [vmem:[#allocation5 + $0xe00] sm:$0xff]
    %v586 = vld [vmem:[#allocation5 + $0xe08] sm:$0xff]
    %v587 = vld [vmem:[#allocation5 + $0xe10] sm:$0xff]
    %v588 = vld [vmem:[#allocation5 + $0xe18] sm:$0xff]
    %v589 = vld [vmem:[#allocation5 + $0xe20] sm:$0xff]
    %v590 = vld [vmem:[#allocation5 + $0xe28] sm:$0xff]
    %v591 = vld [vmem:[#allocation5 + $0xe30] sm:$0xff]
    %v592 = vld [vmem:[#allocation5 + $0xe38] sm:$0xff]
    %v593 = vld [vmem:[#allocation5 + $0xe40] sm:$0xff]
    %v594 = vld [vmem:[#allocation5 + $0xe48] sm:$0xff]
    %v595 = vld [vmem:[#allocation5 + $0xe50] sm:$0xff]
    %v596 = vld [vmem:[#allocation5 + $0xe58] sm:$0xff]
    %v597 = vld [vmem:[#allocation5 + $0xe60] sm:$0xff]
    %v598 = vld [vmem:[#allocation5 + $0xe68] sm:$0xff]
    %v599 = vld [vmem:[#allocation5 + $0xe70] sm:$0xff]
    %v600 = vld [vmem:[#allocation5 + $0xe78] sm:$0xff]
    %v601 = vld [vmem:[#allocation5 + $0xe80] sm:$0xff]
    %v602 = vld [vmem:[#allocation5 + $0xe88] sm:$0xff]
    %v603 = vld [vmem:[#allocation5 + $0xe90] sm:$0xff]
    %v604 = vld [vmem:[#allocation5 + $0xe98] sm:$0xff]
    %v605 = vld [vmem:[#allocation5 + $0xea0] sm:$0xff]
    %v606 = vld [vmem:[#allocation5 + $0xea8] sm:$0xff]
    %v607 = vld [vmem:[#allocation5 + $0xeb0] sm:$0xff]
    %v608 = vld [vmem:[#allocation5 + $0xeb8] sm:$0xff]
    %v609 = vld [vmem:[#allocation5 + $0xec0] sm:$0xff]
    %v610 = vld [vmem:[#allocation5 + $0xec8] sm:$0xff]
    %v611 = vld [vmem:[#allocation5 + $0xed0] sm:$0xff]
    %v612 = vld [vmem:[#allocation5 + $0xed8] sm:$0xff]
    %v613 = vld [vmem:[#allocation5 + $0xee0] sm:$0xff]
    %v614 = vld [vmem:[#allocation5 + $0xee8] sm:$0xff]
    %v615 = vld [vmem:[#allocation5 + $0xef0] sm:$0xff]
    %v616 = vld [vmem:[#allocation5 + $0xef8] sm:$0xff]
    %v617 = vld [vmem:[#allocation5 + $0xf00] sm:$0xff]
    %v618 = vld [vmem:[#allocation5 + $0xf08] sm:$0xff]
    %v619 = vld [vmem:[#allocation5 + $0xf10] sm:$0xff]
    %v620 = vld [vmem:[#allocation5 + $0xf18] sm:$0xff]
    %v621 = vld [vmem:[#allocation5 + $0xf20] sm:$0xff]
    %v622 = vld [vmem:[#allocation5 + $0xf28] sm:$0xff]
    %v623 = vld [vmem:[#allocation5 + $0xf30] sm:$0xff]
    %v624 = vld [vmem:[#allocation5 + $0xf38] sm:$0xff]
    %v625 = vld [vmem:[#allocation5 + $0xf40] sm:$0xff]
    %v626 = vld [vmem:[#allocation5 + $0xf48] sm:$0xff]
    %v627 = vld [vmem:[#allocation5 + $0xf50] sm:$0xff]
    %v628 = vld [vmem:[#allocation5 + $0xf58] sm:$0xff]
    %v629 = vld [vmem:[#allocation5 + $0xf60] sm:$0xff]
    %v630 = vld [vmem:[#allocation5 + $0xf68] sm:$0xff]
    %v631 = vld [vmem:[#allocation5 + $0xf70] sm:$0xff]
    %v632 = vld [vmem:[#allocation5 + $0xf78] sm:$0xff]
    %v633 = vld [vmem:[#allocation5 + $0xf80] sm:$0xff]
    %v634 = vld [vmem:[#allocation5 + $0xf88] sm:$0xff]
    %v635 = vld [vmem:[#allocation5 + $0xf90] sm:$0xff]
    %v636 = vld [vmem:[#allocation5 + $0xf98] sm:$0xff]
    %v637 = vld [vmem:[#allocation5 + $0xfa0] sm:$0xff]
    %v638 = vld [vmem:[#allocation5 + $0xfa8] sm:$0xff]
    %v639 = vld [vmem:[#allocation5 + $0xfb0] sm:$0xff]
    %v640 = vld [vmem:[#allocation5 + $0xfb8] sm:$0xff]
    %v641 = vld [vmem:[#allocation5 + $0xfc0] sm:$0xff]
    %v642 = vld [vmem:[#allocation5 + $0xfc8] sm:$0xff]
    %v643 = vld [vmem:[#allocation5 + $0xfd0] sm:$0xff]
    %v644 = vld [vmem:[#allocation5 + $0xfd8] sm:$0xff]
    %v645 = vld [vmem:[#allocation5 + $0xfe0] sm:$0xff]
    %v646 = vld [vmem:[#allocation5 + $0xfe8] sm:$0xff]
    %v647 = vld [vmem:[#allocation5 + $0xff0] sm:$0xff]
    %v648 = vld [vmem:[#allocation5 + $0xff8] sm:$0xff]
    %v649 = vld [vmem:[#allocation5 + $0x1000] sm:$0xff]
    %v650 = vld [vmem:[#allocation5 + $0x1008] sm:$0xff]
    %v651 = vld [vmem:[#allocation5 + $0x1010] sm:$0xff]
    %v652 = vld [vmem:[#allocation5 + $0x1018] sm:$0xff]
    %v653 = vld [vmem:[#allocation5 + $0x1020] sm:$0xff]
    %v654 = vld [vmem:[#allocation5 + $0x1028] sm:$0xff]
    %v655 = vld [vmem:[#allocation5 + $0x1030] sm:$0xff]
    %v656 = vld [vmem:[#allocation5 + $0x1038] sm:$0xff]
    %v657 = vld [vmem:[#allocation5 + $0x1040] sm:$0xff]
    %v658 = vld [vmem:[#allocation5 + $0x1048] sm:$0xff]
    %v659 = vld [vmem:[#allocation5 + $0x1050] sm:$0xff]
    %v660 = vld [vmem:[#allocation5 + $0x1058] sm:$0xff]
    %v661 = vld [vmem:[#allocation5 + $0x1060] sm:$0xff]
    %v662 = vld [vmem:[#allocation5 + $0x1068] sm:$0xff]
    %v663 = vld [vmem:[#allocation5 + $0x1070] sm:$0xff]
    %v664 = vld [vmem:[#allocation5 + $0x1078] sm:$0xff]
    %v665 = vld [vmem:[#allocation5 + $0x1080] sm:$0xff]
    %v666 = vld [vmem:[#allocation5 + $0x1088] sm:$0xff]
    %v667 = vld [vmem:[#allocation5 + $0x1090] sm:$0xff]
    %v668 = vld [vmem:[#allocation5 + $0x1098] sm:$0xff]
    %v669 = vld [vmem:[#allocation5 + $0x10a0] sm:$0xff]
    %v670 = vld [vmem:[#allocation5 + $0x10a8] sm:$0xff]
    %v671 = vld [vmem:[#allocation5 + $0x10b0] sm:$0xff]
    %v672 = vld [vmem:[#allocation5 + $0x10b8] sm:$0xff]
    %v673 = vld [vmem:[#allocation5 + $0x10c0] sm:$0xff]
    %v674 = vld [vmem:[#allocation5 + $0x10c8] sm:$0xff]
    %v675 = vld [vmem:[#allocation5 + $0x10d0] sm:$0xff]
    %v676 = vld [vmem:[#allocation5 + $0x10d8] sm:$0xff]
    %v677 = vld [vmem:[#allocation5 + $0x10e0] sm:$0xff]
    %v678 = vld [vmem:[#allocation5 + $0x10e8] sm:$0xff]
    %v679 = vld [vmem:[#allocation5 + $0x10f0] sm:$0xff]
    %v680 = vld [vmem:[#allocation5 + $0x10f8] sm:$0xff]
    %v681 = vld [vmem:[#allocation5 + $0x1100] sm:$0xff]
    %v682 = vld [vmem:[#allocation5 + $0x1108] sm:$0xff]
    %v683 = vld [vmem:[#allocation5 + $0x1110] sm:$0xff]
    %v684 = vld [vmem:[#allocation5 + $0x1118] sm:$0xff]
    %v685 = vld [vmem:[#allocation5 + $0x1120] sm:$0xff]
    %v686 = vld [vmem:[#allocation5 + $0x1128] sm:$0xff]
    %v687 = vld [vmem:[#allocation5 + $0x1130] sm:$0xff]
    %v688 = vld [vmem:[#allocation5 + $0x1138] sm:$0xff]
    %v689 = vld [vmem:[#allocation5 + $0x1140] sm:$0xff]
    %v690 = vld [vmem:[#allocation5 + $0x1148] sm:$0xff]
    %v691 = vld [vmem:[#allocation5 + $0x1150] sm:$0xff]
    %v692 = vld [vmem:[#allocation5 + $0x1158] sm:$0xff]
    %v693 = vld [vmem:[#allocation5 + $0x1160] sm:$0xff]
    %v694 = vld [vmem:[#allocation5 + $0x1168] sm:$0xff]
    %v695 = vld [vmem:[#allocation5 + $0x1170] sm:$0xff]
    %v696 = vld [vmem:[#allocation5 + $0x1178] sm:$0xff]
    %v697 = vld [vmem:[#allocation5 + $0x1180] sm:$0xff]
    %v698 = vld [vmem:[#allocation5 + $0x1188] sm:$0xff]
    %v699 = vld [vmem:[#allocation5 + $0x1190] sm:$0xff]
    %v700 = vld [vmem:[#allocation5 + $0x1198] sm:$0xff]
    %v701 = vld [vmem:[#allocation5 + $0x11a0] sm:$0xff]
    %v702 = vld [vmem:[#allocation5 + $0x11a8] sm:$0xff]
    %v703 = vld [vmem:[#allocation5 + $0x11b0] sm:$0xff]
    %v704 = vld [vmem:[#allocation5 + $0x11b8] sm:$0xff]
    %v705 = vld [vmem:[#allocation5 + $0x11c0] sm:$0xff]
    %v706 = vld [vmem:[#allocation5 + $0x11c8] sm:$0xff]
    %v707 = vld [vmem:[#allocation5 + $0x11d0] sm:$0xff]
    %v708 = vld [vmem:[#allocation5 + $0x11d8] sm:$0xff]
    %v709 = vld [vmem:[#allocation5 + $0x11e0] sm:$0xff]
    %v710 = vld [vmem:[#allocation5 + $0x11e8] sm:$0xff]
    %v711 = vld [vmem:[#allocation5 + $0x11f0] sm:$0xff]
    %v712 = vld [vmem:[#allocation5 + $0x11f8] sm:$0xff]
    %v713 = vld [vmem:[#allocation7] sm:$0xf]
    %v715 = vperm.slane %v713, 0
    %v716 = vperm.slane %v713, 1
    %v717 = vperm.slane %v713, 2
    %v718 = vperm.slane %v713, 3
    %723 = vmatpush.msra.mxu0 %v197
    %724 = vmatpush.msra.mxu0 %v193
    %725 = vmatpush.msra.mxu0 %v189
    %726 = vmatpush.msra.mxu0 %v185
    %727 = vmatpush.msra.mxu0 %v181
    %728 = vmatpush.msra.mxu0 %v177
    %729 = vmatpush.msra.mxu0 %v173
    %730 = vmatpush.msra.mxu0 %v169
    %731 = vmatpush.msra.mxu0 %v165
    %732 = vmatpush.msra.mxu0 %v161
    %733 = vmatpush.msra.mxu0 %v157
    %734 = vmatpush.msra.mxu0 %v153
    %735 = vmatpush.msra.mxu0 %v149
    %736 = vmatpush.msra.mxu0 %v145
    %737 = vmatpush.msra.mxu0 %v141
    %738 = vmatpush.msra.mxu0 %v137
    %739 = vmatmul.f32.gmra.mxu0 %v128
    %v740 = vpop.f32.mrf.mxu0
    %v741 = vadd.f32 %v715, %v740
    %742 = vdwg.mxu0
    %743 = vmatpush.msra.mxu0 %v261
    %744 = vmatpush.msra.mxu0 %v257
    %745 = vmatpush.msra.mxu0 %v253
    %746 = vmatpush.msra.mxu0 %v249
    %747 = vmatpush.msra.mxu0 %v245
    %748 = vmatpush.msra.mxu0 %v241
    %749 = vmatpush.msra.mxu0 %v237
    %750 = vmatpush.msra.mxu0 %v233
    %751 = vmatpush.msra.mxu0 %v229
    %752 = vmatpush.msra.mxu0 %v225
    %753 = vmatpush.msra.mxu0 %v221
    %754 = vmatpush.msra.mxu0 %v217
    %755 = vmatpush.msra.mxu0 %v213
    %756 = vmatpush.msra.mxu0 %v209
    %757 = vmatpush.msra.mxu0 %v205
    %758 = vmatpush.msra.mxu0 %v201
    %759 = vmatmul.f32.gmra.mxu0 %v129
    %v760 = vpop.f32.mrf.mxu0
    %v761 = vadd.f32 %v741, %v760
    %762 = vdwg.mxu0
    %763 = vmatpush.msra.mxu0 %v325
    %764 = vmatpush.msra.mxu0 %v321
    %765 = vmatpush.msra.mxu0 %v317
    %766 = vmatpush.msra.mxu0 %v313
    %767 = vmatpush.msra.mxu0 %v309
    %768 = vmatpush.msra.mxu0 %v305
    %769 = vmatpush.msra.mxu0 %v301
    %770 = vmatpush.msra.mxu0 %v297
    %771 = vmatpush.msra.mxu0 %v293
    %772 = vmatpush.msra.mxu0 %v289
    %773 = vmatpush.msra.mxu0 %v285
    %774 = vmatpush.msra.mxu0 %v281
    %775 = vmatpush.msra.mxu0 %v277
    %776 = vmatpush.msra.mxu0 %v273
    %777 = vmatpush.msra.mxu0 %v269
    %778 = vmatpush.msra.mxu0 %v265
    %779 = vmatmul.f32.gmra.mxu0 %v130
    %v780 = vpop.f32.mrf.mxu0
    %v781 = vadd.f32 %v761, %v780
    %782 = vdwg.mxu0
    %783 = vmatpush.msra.mxu0 %v389
    %784 = vmatpush.msra.mxu0 %v385
    %785 = vmatpush.msra.mxu0 %v381
    %786 = vmatpush.msra.mxu0 %v377
    %787 = vmatpush.msra.mxu0 %v373
    %788 = vmatpush.msra.mxu0 %v369
    %789 = vmatpush.msra.mxu0 %v365
    %790 = vmatpush.msra.mxu0 %v361
    %791 = vmatpush.msra.mxu0 %v357
    %792 = vmatpush.msra.mxu0 %v353
    %793 = vmatpush.msra.mxu0 %v349
    %794 = vmatpush.msra.mxu0 %v345
    %795 = vmatpush.msra.mxu0 %v341
    %796 = vmatpush.msra.mxu0 %v337
    %797 = vmatpush.msra.mxu0 %v333
    %798 = vmatpush.msra.mxu0 %v329
    %799 = vmatmul.f32.gmra.mxu0 %v131
    %v800 = vpop.f32.mrf.mxu0
    %v801 = vadd.f32 %v781, %v800
    %802 = vdwg.mxu0
    %803 = vmatpush.msra.mxu0 %v453
    %804 = vmatpush.msra.mxu0 %v449
    %805 = vmatpush.msra.mxu0 %v445
    %806 = vmatpush.msra.mxu0 %v441
    %807 = vmatpush.msra.mxu0 %v437
    %808 = vmatpush.msra.mxu0 %v433
    %809 = vmatpush.msra.mxu0 %v429
    %810 = vmatpush.msra.mxu0 %v425
    %811 = vmatpush.msra.mxu0 %v421
    %812 = vmatpush.msra.mxu0 %v417
    %813 = vmatpush.msra.mxu0 %v413
    %814 = vmatpush.msra.mxu0 %v409
    %815 = vmatpush.msra.mxu0 %v405
    %816 = vmatpush.msra.mxu0 %v401
    %817 = vmatpush.msra.mxu0 %v397
    %818 = vmatpush.msra.mxu0 %v393
    %819 = vmatmul.f32.gmra.mxu0 %v132
    %v820 = vpop.f32.mrf.mxu0
    %v821 = vadd.f32 %v801, %v820
    %822 = vdwg.mxu0
    %823 = vmatpush.msra.mxu0 %v517
    %824 = vmatpush.msra.mxu0 %v513
    %825 = vmatpush.msra.mxu0 %v509
    %826 = vmatpush.msra.mxu0 %v505
    %827 = vmatpush.msra.mxu0 %v501
    %828 = vmatpush.msra.mxu0 %v497
    %829 = vmatpush.msra.mxu0 %v493
    %830 = vmatpush.msra.mxu0 %v489
    %831 = vmatpush.msra.mxu0 %v485
    %832 = vmatpush.msra.mxu0 %v481
    %833 = vmatpush.msra.mxu0 %v477
    %834 = vmatpush.msra.mxu0 %v473
    %835 = vmatpush.msra.mxu0 %v469
    %836 = vmatpush.msra.mxu0 %v465
    %837 = vmatpush.msra.mxu0 %v461
    %838 = vmatpush.msra.mxu0 %v457
    %839 = vmatmul.f32.gmra.mxu0 %v133
    %v840 = vpop.f32.mrf.mxu0
    %v841 = vadd.f32 %v821, %v840
    %842 = vdwg.mxu0
    %843 = vmatpush.msra.mxu0 %v581
    %844 = vmatpush.msra.mxu0 %v577
    %845 = vmatpush.msra.mxu0 %v573
    %846 = vmatpush.msra.mxu0 %v569
    %847 = vmatpush.msra.mxu0 %v565
    %848 = vmatpush.msra.mxu0 %v561
    %849 = vmatpush.msra.mxu0 %v557
    %850 = vmatpush.msra.mxu0 %v553
    %851 = vmatpush.msra.mxu0 %v549
    %852 = vmatpush.msra.mxu0 %v545
    %853 = vmatpush.msra.mxu0 %v541
    %854 = vmatpush.msra.mxu0 %v537
    %855 = vmatpush.msra.mxu0 %v533
    %856 = vmatpush.msra.mxu0 %v529
    %857 = vmatpush.msra.mxu0 %v525
    %858 = vmatpush.msra.mxu0 %v521
    %859 = vmatmul.f32.gmra.mxu0 %v134
    %v860 = vpop.f32.mrf.mxu0
    %v861 = vadd.f32 %v841, %v860
    %862 = vdwg.mxu0
    %863 = vmatpush.msra.mxu0 %v645
    %864 = vmatpush.msra.mxu0 %v641
    %865 = vmatpush.msra.mxu0 %v637
    %866 = vmatpush.msra.mxu0 %v633
    %867 = vmatpush.msra.mxu0 %v629
    %868 = vmatpush.msra.mxu0 %v625
    %869 = vmatpush.msra.mxu0 %v621
    %870 = vmatpush.msra.mxu0 %v617
    %871 = vmatpush.msra.mxu0 %v613
    %872 = vmatpush.msra.mxu0 %v609
    %873 = vmatpush.msra.mxu0 %v605
    %874 = vmatpush.msra.mxu0 %v601
    %875 = vmatpush.msra.mxu0 %v597
    %876 = vmatpush.msra.mxu0 %v593
    %877 = vmatpush.msra.mxu0 %v589
    %878 = vmatpush.msra.mxu0 %v585
    %879 = vmatmul.f32.gmra.mxu0 %v135
    %v880 = vpop.f32.mrf.mxu0
    %v881 = vadd.f32 %v861, %v880
    %882 = vdwg.mxu0
    %883 = vmatpush.msra.mxu0 %v709
    %884 = vmatpush.msra.mxu0 %v705
    %885 = vmatpush.msra.mxu0 %v701
    %886 = vmatpush.msra.mxu0 %v697
    %887 = vmatpush.msra.mxu0 %v693
    %888 = vmatpush.msra.mxu0 %v689
    %889 = vmatpush.msra.mxu0 %v685
    %890 = vmatpush.msra.mxu0 %v681
    %891 = vmatpush.msra.mxu0 %v677
    %892 = vmatpush.msra.mxu0 %v673
    %893 = vmatpush.msra.mxu0 %v669
    %894 = vmatpush.msra.mxu0 %v665
    %895 = vmatpush.msra.mxu0 %v661
    %896 = vmatpush.msra.mxu0 %v657
    %897 = vmatpush.msra.mxu0 %v653
    %898 = vmatpush.msra.mxu0 %v649
    %899 = vmatmul.f32.gmra.mxu0 %v136
    %v900 = vpop.f32.mrf.mxu0
    %v901 = vadd.f32 %v881, %v900
    %902 = vdwg.mxu0
    %903 = vmatpush.msra.mxu0 %v198
    %904 = vmatpush.msra.mxu0 %v194
    %905 = vmatpush.msra.mxu0 %v190
    %906 = vmatpush.msra.mxu0 %v186
    %907 = vmatpush.msra.mxu0 %v182
    %908 = vmatpush.msra.mxu0 %v178
    %909 = vmatpush.msra.mxu0 %v174
    %910 = vmatpush.msra.mxu0 %v170
    %911 = vmatpush.msra.mxu0 %v166
    %912 = vmatpush.msra.mxu0 %v162
    %913 = vmatpush.msra.mxu0 %v158
    %914 = vmatpush.msra.mxu0 %v154
    %915 = vmatpush.msra.mxu0 %v150
    %916 = vmatpush.msra.mxu0 %v146
    %917 = vmatpush.msra.mxu0 %v142
    %918 = vmatpush.msra.mxu0 %v138
    %919 = vmatmul.f32.gmra.mxu0 %v128
    %v920 = vpop.f32.mrf.mxu0
    %v921 = vadd.f32 %v716, %v920
    %922 = vdwg.mxu0
    %923 = vmatpush.msra.mxu0 %v262
    %924 = vmatpush.msra.mxu0 %v258
    %925 = vmatpush.msra.mxu0 %v254
    %926 = vmatpush.msra.mxu0 %v250
    %927 = vmatpush.msra.mxu0 %v246
    %928 = vmatpush.msra.mxu0 %v242
    %929 = vmatpush.msra.mxu0 %v238
    %930 = vmatpush.msra.mxu0 %v234
    %931 = vmatpush.msra.mxu0 %v230
    %932 = vmatpush.msra.mxu0 %v226
    %933 = vmatpush.msra.mxu0 %v222
    %934 = vmatpush.msra.mxu0 %v218
    %935 = vmatpush.msra.mxu0 %v214
    %936 = vmatpush.msra.mxu0 %v210
    %937 = vmatpush.msra.mxu0 %v206
    %938 = vmatpush.msra.mxu0 %v202
    %939 = vmatmul.f32.gmra.mxu0 %v129
    %v940 = vpop.f32.mrf.mxu0
    %v941 = vadd.f32 %v921, %v940
    %942 = vdwg.mxu0
    %943 = vmatpush.msra.mxu0 %v326
    %944 = vmatpush.msra.mxu0 %v322
    %945 = vmatpush.msra.mxu0 %v318
    %946 = vmatpush.msra.mxu0 %v314
    %947 = vmatpush.msra.mxu0 %v310
    %948 = vmatpush.msra.mxu0 %v306
    %949 = vmatpush.msra.mxu0 %v302
    %950 = vmatpush.msra.mxu0 %v298
    %951 = vmatpush.msra.mxu0 %v294
    %952 = vmatpush.msra.mxu0 %v290
    %953 = vmatpush.msra.mxu0 %v286
    %954 = vmatpush.msra.mxu0 %v282
    %955 = vmatpush.msra.mxu0 %v278
    %956 = vmatpush.msra.mxu0 %v274
    %957 = vmatpush.msra.mxu0 %v270
    %958 = vmatpush.msra.mxu0 %v266
    %959 = vmatmul.f32.gmra.mxu0 %v130
    %v960 = vpop.f32.mrf.mxu0
    %v961 = vadd.f32 %v941, %v960
    %962 = vdwg.mxu0
    %963 = vmatpush.msra.mxu0 %v390
    %964 = vmatpush.msra.mxu0 %v386
    %965 = vmatpush.msra.mxu0 %v382
    %966 = vmatpush.msra.mxu0 %v378
    %967 = vmatpush.msra.mxu0 %v374
    %968 = vmatpush.msra.mxu0 %v370
    %969 = vmatpush.msra.mxu0 %v366
    %970 = vmatpush.msra.mxu0 %v362
    %971 = vmatpush.msra.mxu0 %v358
    %972 = vmatpush.msra.mxu0 %v354
    %973 = vmatpush.msra.mxu0 %v350
    %974 = vmatpush.msra.mxu0 %v346
    %975 = vmatpush.msra.mxu0 %v342
    %976 = vmatpush.msra.mxu0 %v338
    %977 = vmatpush.msra.mxu0 %v334
    %978 = vmatpush.msra.mxu0 %v330
    %979 = vmatmul.f32.gmra.mxu0 %v131
    %v980 = vpop.f32.mrf.mxu0
    %v981 = vadd.f32 %v961, %v980
    %982 = vdwg.mxu0
    %983 = vmatpush.msra.mxu0 %v454
    %984 = vmatpush.msra.mxu0 %v450
    %985 = vmatpush.msra.mxu0 %v446
    %986 = vmatpush.msra.mxu0 %v442
    %987 = vmatpush.msra.mxu0 %v438
    %988 = vmatpush.msra.mxu0 %v434
    %989 = vmatpush.msra.mxu0 %v430
    %990 = vmatpush.msra.mxu0 %v426
    %991 = vmatpush.msra.mxu0 %v422
    %992 = vmatpush.msra.mxu0 %v418
    %993 = vmatpush.msra.mxu0 %v414
    %994 = vmatpush.msra.mxu0 %v410
    %995 = vmatpush.msra.mxu0 %v406
    %996 = vmatpush.msra.mxu0 %v402
    %997 = vmatpush.msra.mxu0 %v398
    %998 = vmatpush.msra.mxu0 %v394
    %999 = vmatmul.f32.gmra.mxu0 %v132
    %v1000 = vpop.f32.mrf.mxu0
    %v1001 = vadd.f32 %v981, %v1000
    %1002 = vdwg.mxu0
    %1003 = vmatpush.msra.mxu0 %v518
    %1004 = vmatpush.msra.mxu0 %v514
    %1005 = vmatpush.msra.mxu0 %v510
    %1006 = vmatpush.msra.mxu0 %v506
    %1007 = vmatpush.msra.mxu0 %v502
    %1008 = vmatpush.msra.mxu0 %v498
    %1009 = vmatpush.msra.mxu0 %v494
    %1010 = vmatpush.msra.mxu0 %v490
    %1011 = vmatpush.msra.mxu0 %v486
    %1012 = vmatpush.msra.mxu0 %v482
    %1013 = vmatpush.msra.mxu0 %v478
    %1014 = vmatpush.msra.mxu0 %v474
    %1015 = vmatpush.msra.mxu0 %v470
    %1016 = vmatpush.msra.mxu0 %v466
    %1017 = vmatpush.msra.mxu0 %v462
    %1018 = vmatpush.msra.mxu0 %v458
    %1019 = vmatmul.f32.gmra.mxu0 %v133
    %v1020 = vpop.f32.mrf.mxu0
    %v1021 = vadd.f32 %v1001, %v1020
    %1022 = vdwg.mxu0
    %1023 = vmatpush.msra.mxu0 %v582
    %1024 = vmatpush.msra.mxu0 %v578
    %1025 = vmatpush.msra.mxu0 %v574
    %1026 = vmatpush.msra.mxu0 %v570
    %1027 = vmatpush.msra.mxu0 %v566
    %1028 = vmatpush.msra.mxu0 %v562
    %1029 = vmatpush.msra.mxu0 %v558
    %1030 = vmatpush.msra.mxu0 %v554
    %1031 = vmatpush.msra.mxu0 %v550
    %1032 = vmatpush.msra.mxu0 %v546
    %1033 = vmatpush.msra.mxu0 %v542
    %1034 = vmatpush.msra.mxu0 %v538
    %1035 = vmatpush.msra.mxu0 %v534
    %1036 = vmatpush.msra.mxu0 %v530
    %1037 = vmatpush.msra.mxu0 %v526
    %1038 = vmatpush.msra.mxu0 %v522
    %1039 = vmatmul.f32.gmra.mxu0 %v134
    %v1040 = vpop.f32.mrf.mxu0
    %v1041 = vadd.f32 %v1021, %v1040
    %1042 = vdwg.mxu0
    %1043 = vmatpush.msra.mxu0 %v646
    %1044 = vmatpush.msra.mxu0 %v642
    %1045 = vmatpush.msra.mxu0 %v638
    %1046 = vmatpush.msra.mxu0 %v634
    %1047 = vmatpush.msra.mxu0 %v630
    %1048 = vmatpush.msra.mxu0 %v626
    %1049 = vmatpush.msra.mxu0 %v622
    %1050 = vmatpush.msra.mxu0 %v618
    %1051 = vmatpush.msra.mxu0 %v614
    %1052 = vmatpush.msra.mxu0 %v610
    %1053 = vmatpush.msra.mxu0 %v606
    %1054 = vmatpush.msra.mxu0 %v602
    %1055 = vmatpush.msra.mxu0 %v598
    %1056 = vmatpush.msra.mxu0 %v594
    %1057 = vmatpush.msra.mxu0 %v590
    %1058 = vmatpush.msra.mxu0 %v586
    %1059 = vmatmul.f32.gmra.mxu0 %v135
    %v1060 = vpop.f32.mrf.mxu0
    %v1061 = vadd.f32 %v1041, %v1060
    %1062 = vdwg.mxu0
    %1063 = vmatpush.msra.mxu0 %v710
    %1064 = vmatpush.msra.mxu0 %v706
    %1065 = vmatpush.msra.mxu0 %v702
    %1066 = vmatpush.msra.mxu0 %v698
    %1067 = vmatpush.msra.mxu0 %v694
    %1068 = vmatpush.msra.mxu0 %v690
    %1069 = vmatpush.msra.mxu0 %v686
    %1070 = vmatpush.msra.mxu0 %v682
    %1071 = vmatpush.msra.mxu0 %v678
    %1072 = vmatpush.msra.mxu0 %v674
    %1073 = vmatpush.msra.mxu0 %v670
    %1074 = vmatpush.msra.mxu0 %v666
    %1075 = vmatpush.msra.mxu0 %v662
    %1076 = vmatpush.msra.mxu0 %v658
    %1077 = vmatpush.msra.mxu0 %v654
    %1078 = vmatpush.msra.mxu0 %v650
    %1079 = vmatmul.f32.gmra.mxu0 %v136
    %v1080 = vpop.f32.mrf.mxu0
    %v1081 = vadd.f32 %v1061, %v1080
    %1082 = vdwg.mxu0
    %1083 = vmatpush.msra.mxu0 %v199
    %1084 = vmatpush.msra.mxu0 %v195
    %1085 = vmatpush.msra.mxu0 %v191
    %1086 = vmatpush.msra.mxu0 %v187
    %1087 = vmatpush.msra.mxu0 %v183
    %1088 = vmatpush.msra.mxu0 %v179
    %1089 = vmatpush.msra.mxu0 %v175
    %1090 = vmatpush.msra.mxu0 %v171
    %1091 = vmatpush.msra.mxu0 %v167
    %1092 = vmatpush.msra.mxu0 %v163
    %1093 = vmatpush.msra.mxu0 %v159
    %1094 = vmatpush.msra.mxu0 %v155
    %1095 = vmatpush.msra.mxu0 %v151
    %1096 = vmatpush.msra.mxu0 %v147
    %1097 = vmatpush.msra.mxu0 %v143
    %1098 = vmatpush.msra.mxu0 %v139
    %1099 = vmatmul.f32.gmra.mxu0 %v128
    %v1100 = vpop.f32.mrf.mxu0
    %v1101 = vadd.f32 %v717, %v1100
    %1102 = vdwg.mxu0
    %1103 = vmatpush.msra.mxu0 %v263
    %1104 = vmatpush.msra.mxu0 %v259
    %1105 = vmatpush.msra.mxu0 %v255
    %1106 = vmatpush.msra.mxu0 %v251
    %1107 = vmatpush.msra.mxu0 %v247
    %1108 = vmatpush.msra.mxu0 %v243
    %1109 = vmatpush.msra.mxu0 %v239
    %1110 = vmatpush.msra.mxu0 %v235
    %1111 = vmatpush.msra.mxu0 %v231
    %1112 = vmatpush.msra.mxu0 %v227
    %1113 = vmatpush.msra.mxu0 %v223
    %1114 = vmatpush.msra.mxu0 %v219
    %1115 = vmatpush.msra.mxu0 %v215
    %1116 = vmatpush.msra.mxu0 %v211
    %1117 = vmatpush.msra.mxu0 %v207
    %1118 = vmatpush.msra.mxu0 %v203
    %1119 = vmatmul.f32.gmra.mxu0 %v129
    %v1120 = vpop.f32.mrf.mxu0
    %v1121 = vadd.f32 %v1101, %v1120
    %1122 = vdwg.mxu0
    %1123 = vmatpush.msra.mxu0 %v327
    %1124 = vmatpush.msra.mxu0 %v323
    %1125 = vmatpush.msra.mxu0 %v319
    %1126 = vmatpush.msra.mxu0 %v315
    %1127 = vmatpush.msra.mxu0 %v311
    %1128 = vmatpush.msra.mxu0 %v307
    %1129 = vmatpush.msra.mxu0 %v303
    %1130 = vmatpush.msra.mxu0 %v299
    %1131 = vmatpush.msra.mxu0 %v295
    %1132 = vmatpush.msra.mxu0 %v291
    %1133 = vmatpush.msra.mxu0 %v287
    %1134 = vmatpush.msra.mxu0 %v283
    %1135 = vmatpush.msra.mxu0 %v279
    %1136 = vmatpush.msra.mxu0 %v275
    %1137 = vmatpush.msra.mxu0 %v271
    %1138 = vmatpush.msra.mxu0 %v267
    %1139 = vmatmul.f32.gmra.mxu0 %v130
    %v1140 = vpop.f32.mrf.mxu0
    %v1141 = vadd.f32 %v1121, %v1140
    %1142 = vdwg.mxu0
    %1143 = vmatpush.msra.mxu0 %v391
    %1144 = vmatpush.msra.mxu0 %v387
    %1145 = vmatpush.msra.mxu0 %v383
    %1146 = vmatpush.msra.mxu0 %v379
    %1147 = vmatpush.msra.mxu0 %v375
    %1148 = vmatpush.msra.mxu0 %v371
    %1149 = vmatpush.msra.mxu0 %v367
    %1150 = vmatpush.msra.mxu0 %v363
    %1151 = vmatpush.msra.mxu0 %v359
    %1152 = vmatpush.msra.mxu0 %v355
    %1153 = vmatpush.msra.mxu0 %v351
    %1154 = vmatpush.msra.mxu0 %v347
    %1155 = vmatpush.msra.mxu0 %v343
    %1156 = vmatpush.msra.mxu0 %v339
    %1157 = vmatpush.msra.mxu0 %v335
    %1158 = vmatpush.msra.mxu0 %v331
    %1159 = vmatmul.f32.gmra.mxu0 %v131
    %v1160 = vpop.f32.mrf.mxu0
    %v1161 = vadd.f32 %v1141, %v1160
    %1162 = vdwg.mxu0
    %1163 = vmatpush.msra.mxu0 %v455
    %1164 = vmatpush.msra.mxu0 %v451
    %1165 = vmatpush.msra.mxu0 %v447
    %1166 = vmatpush.msra.mxu0 %v443
    %1167 = vmatpush.msra.mxu0 %v439
    %1168 = vmatpush.msra.mxu0 %v435
    %1169 = vmatpush.msra.mxu0 %v431
    %1170 = vmatpush.msra.mxu0 %v427
    %1171 = vmatpush.msra.mxu0 %v423
    %1172 = vmatpush.msra.mxu0 %v419
    %1173 = vmatpush.msra.mxu0 %v415
    %1174 = vmatpush.msra.mxu0 %v411
    %1175 = vmatpush.msra.mxu0 %v407
    %1176 = vmatpush.msra.mxu0 %v403
    %1177 = vmatpush.msra.mxu0 %v399
    %1178 = vmatpush.msra.mxu0 %v395
    %1179 = vmatmul.f32.gmra.mxu0 %v132
    %v1180 = vpop.f32.mrf.mxu0
    %v1181 = vadd.f32 %v1161, %v1180
    %1182 = vdwg.mxu0
    %1183 = vmatpush.msra.mxu0 %v519
    %1184 = vmatpush.msra.mxu0 %v515
    %1185 = vmatpush.msra.mxu0 %v511
    %1186 = vmatpush.msra.mxu0 %v507
    %1187 = vmatpush.msra.mxu0 %v503
    %1188 = vmatpush.msra.mxu0 %v499
    %1189 = vmatpush.msra.mxu0 %v495
    %1190 = vmatpush.msra.mxu0 %v491
    %1191 = vmatpush.msra.mxu0 %v487
    %1192 = vmatpush.msra.mxu0 %v483
    %1193 = vmatpush.msra.mxu0 %v479
    %1194 = vmatpush.msra.mxu0 %v475
    %1195 = vmatpush.msra.mxu0 %v471
    %1196 = vmatpush.msra.mxu0 %v467
    %1197 = vmatpush.msra.mxu0 %v463
    %1198 = vmatpush.msra.mxu0 %v459
    %1199 = vmatmul.f32.gmra.mxu0 %v133
    %v1200 = vpop.f32.mrf.mxu0
    %v1201 = vadd.f32 %v1181, %v1200
    %1202 = vdwg.mxu0
    %1203 = vmatpush.msra.mxu0 %v583
    %1204 = vmatpush.msra.mxu0 %v579
    %1205 = vmatpush.msra.mxu0 %v575
    %1206 = vmatpush.msra.mxu0 %v571
    %1207 = vmatpush.msra.mxu0 %v567
    %1208 = vmatpush.msra.mxu0 %v563
    %1209 = vmatpush.msra.mxu0 %v559
    %1210 = vmatpush.msra.mxu0 %v555
    %1211 = vmatpush.msra.mxu0 %v551
    %1212 = vmatpush.msra.mxu0 %v547
    %1213 = vmatpush.msra.mxu0 %v543
    %1214 = vmatpush.msra.mxu0 %v539
    %1215 = vmatpush.msra.mxu0 %v535
    %1216 = vmatpush.msra.mxu0 %v531
    %1217 = vmatpush.msra.mxu0 %v527
    %1218 = vmatpush.msra.mxu0 %v523
    %1219 = vmatmul.f32.gmra.mxu0 %v134
    %v1220 = vpop.f32.mrf.mxu0
    %v1221 = vadd.f32 %v1201, %v1220
    %1222 = vdwg.mxu0
    %1223 = vmatpush.msra.mxu0 %v647
    %1224 = vmatpush.msra.mxu0 %v643
    %1225 = vmatpush.msra.mxu0 %v639
    %1226 = vmatpush.msra.mxu0 %v635
    %1227 = vmatpush.msra.mxu0 %v631
    %1228 = vmatpush.msra.mxu0 %v627
    %1229 = vmatpush.msra.mxu0 %v623
    %1230 = vmatpush.msra.mxu0 %v619
    %1231 = vmatpush.msra.mxu0 %v615
    %1232 = vmatpush.msra.mxu0 %v611
    %1233 = vmatpush.msra.mxu0 %v607
    %1234 = vmatpush.msra.mxu0 %v603
    %1235 = vmatpush.msra.mxu0 %v599
    %1236 = vmatpush.msra.mxu0 %v595
    %1237 = vmatpush.msra.mxu0 %v591
    %1238 = vmatpush.msra.mxu0 %v587
    %1239 = vmatmul.f32.gmra.mxu0 %v135
    %v1240 = vpop.f32.mrf.mxu0
    %v1241 = vadd.f32 %v1221, %v1240
    %1242 = vdwg.mxu0
    %1243 = vmatpush.msra.mxu0 %v711
    %1244 = vmatpush.msra.mxu0 %v707
    %1245 = vmatpush.msra.mxu0 %v703
    %1246 = vmatpush.msra.mxu0 %v699
    %1247 = vmatpush.msra.mxu0 %v695
    %1248 = vmatpush.msra.mxu0 %v691
    %1249 = vmatpush.msra.mxu0 %v687
    %1250 = vmatpush.msra.mxu0 %v683
    %1251 = vmatpush.msra.mxu0 %v679
    %1252 = vmatpush.msra.mxu0 %v675
    %1253 = vmatpush.msra.mxu0 %v671
    %1254 = vmatpush.msra.mxu0 %v667
    %1255 = vmatpush.msra.mxu0 %v663
    %1256 = vmatpush.msra.mxu0 %v659
    %1257 = vmatpush.msra.mxu0 %v655
    %1258 = vmatpush.msra.mxu0 %v651
    %1259 = vmatmul.f32.gmra.mxu0 %v136
    %v1260 = vpop.f32.mrf.mxu0
    %v1261 = vadd.f32 %v1241, %v1260
    %1262 = vdwg.mxu0
    %1263 = vmatpush.msra.mxu0 %v200
    %1264 = vmatpush.msra.mxu0 %v196
    %1265 = vmatpush.msra.mxu0 %v192
    %1266 = vmatpush.msra.mxu0 %v188
    %1267 = vmatpush.msra.mxu0 %v184
    %1268 = vmatpush.msra.mxu0 %v180
    %1269 = vmatpush.msra.mxu0 %v176
    %1270 = vmatpush.msra.mxu0 %v172
    %1271 = vmatpush.msra.mxu0 %v168
    %1272 = vmatpush.msra.mxu0 %v164
    %1273 = vmatpush.msra.mxu0 %v160
    %1274 = vmatpush.msra.mxu0 %v156
    %1275 = vmatpush.msra.mxu0 %v152
    %1276 = vmatpush.msra.mxu0 %v148
    %1277 = vmatpush.msra.mxu0 %v144
    %1278 = vmatpush.msra.mxu0 %v140
    %1279 = vmatmul.f32.gmra.mxu0 %v128
    %v1280 = vpop.f32.mrf.mxu0
    %v1281 = vadd.f32 %v718, %v1280
    %1282 = vdwg.mxu0
    %1283 = vmatpush.msra.mxu0 %v264
    %1284 = vmatpush.msra.mxu0 %v260
    %1285 = vmatpush.msra.mxu0 %v256
    %1286 = vmatpush.msra.mxu0 %v252
    %1287 = vmatpush.msra.mxu0 %v248
    %1288 = vmatpush.msra.mxu0 %v244
    %1289 = vmatpush.msra.mxu0 %v240
    %1290 = vmatpush.msra.mxu0 %v236
    %1291 = vmatpush.msra.mxu0 %v232
    %1292 = vmatpush.msra.mxu0 %v228
    %1293 = vmatpush.msra.mxu0 %v224
    %1294 = vmatpush.msra.mxu0 %v220
    %1295 = vmatpush.msra.mxu0 %v216
    %1296 = vmatpush.msra.mxu0 %v212
    %1297 = vmatpush.msra.mxu0 %v208
    %1298 = vmatpush.msra.mxu0 %v204
    %1299 = vmatmul.f32.gmra.mxu0 %v129
    %v1300 = vpop.f32.mrf.mxu0
    %v1301 = vadd.f32 %v1281, %v1300
    %1302 = vdwg.mxu0
    %1303 = vmatpush.msra.mxu0 %v328
    %1304 = vmatpush.msra.mxu0 %v324
    %1305 = vmatpush.msra.mxu0 %v320
    %1306 = vmatpush.msra.mxu0 %v316
    %1307 = vmatpush.msra.mxu0 %v312
    %1308 = vmatpush.msra.mxu0 %v308
    %1309 = vmatpush.msra.mxu0 %v304
    %1310 = vmatpush.msra.mxu0 %v300
    %1311 = vmatpush.msra.mxu0 %v296
    %1312 = vmatpush.msra.mxu0 %v292
    %1313 = vmatpush.msra.mxu0 %v288
    %1314 = vmatpush.msra.mxu0 %v284
    %1315 = vmatpush.msra.mxu0 %v280
    %1316 = vmatpush.msra.mxu0 %v276
    %1317 = vmatpush.msra.mxu0 %v272
    %1318 = vmatpush.msra.mxu0 %v268
    %1319 = vmatmul.f32.gmra.mxu0 %v130
    %v1320 = vpop.f32.mrf.mxu0
    %v1321 = vadd.f32 %v1301, %v1320
    %1322 = vdwg.mxu0
    %1323 = vmatpush.msra.mxu0 %v392
    %1324 = vmatpush.msra.mxu0 %v388
    %1325 = vmatpush.msra.mxu0 %v384
    %1326 = vmatpush.msra.mxu0 %v380
    %1327 = vmatpush.msra.mxu0 %v376
    %1328 = vmatpush.msra.mxu0 %v372
    %1329 = vmatpush.msra.mxu0 %v368
    %1330 = vmatpush.msra.mxu0 %v364
    %1331 = vmatpush.msra.mxu0 %v360
    %1332 = vmatpush.msra.mxu0 %v356
    %1333 = vmatpush.msra.mxu0 %v352
    %1334 = vmatpush.msra.mxu0 %v348
    %1335 = vmatpush.msra.mxu0 %v344
    %1336 = vmatpush.msra.mxu0 %v340
    %1337 = vmatpush.msra.mxu0 %v336
    %1338 = vmatpush.msra.mxu0 %v332
    %1339 = vmatmul.f32.gmra.mxu0 %v131
    %v1340 = vpop.f32.mrf.mxu0
    %v1341 = vadd.f32 %v1321, %v1340
    %1342 = vdwg.mxu0
    %1343 = vmatpush.msra.mxu0 %v456
    %1344 = vmatpush.msra.mxu0 %v452
    %1345 = vmatpush.msra.mxu0 %v448
    %1346 = vmatpush.msra.mxu0 %v444
    %1347 = vmatpush.msra.mxu0 %v440
    %1348 = vmatpush.msra.mxu0 %v436
    %1349 = vmatpush.msra.mxu0 %v432
    %1350 = vmatpush.msra.mxu0 %v428
    %1351 = vmatpush.msra.mxu0 %v424
    %1352 = vmatpush.msra.mxu0 %v420
    %1353 = vmatpush.msra.mxu0 %v416
    %1354 = vmatpush.msra.mxu0 %v412
    %1355 = vmatpush.msra.mxu0 %v408
    %1356 = vmatpush.msra.mxu0 %v404
    %1357 = vmatpush.msra.mxu0 %v400
    %1358 = vmatpush.msra.mxu0 %v396
    %1359 = vmatmul.f32.gmra.mxu0 %v132
    %v1360 = vpop.f32.mrf.mxu0
    %v1361 = vadd.f32 %v1341, %v1360
    %1362 = vdwg.mxu0
    %1363 = vmatpush.msra.mxu0 %v520
    %1364 = vmatpush.msra.mxu0 %v516
    %1365 = vmatpush.msra.mxu0 %v512
    %1366 = vmatpush.msra.mxu0 %v508
    %1367 = vmatpush.msra.mxu0 %v504
    %1368 = vmatpush.msra.mxu0 %v500
    %1369 = vmatpush.msra.mxu0 %v496
    %1370 = vmatpush.msra.mxu0 %v492
    %1371 = vmatpush.msra.mxu0 %v488
    %1372 = vmatpush.msra.mxu0 %v484
    %1373 = vmatpush.msra.mxu0 %v480
    %1374 = vmatpush.msra.mxu0 %v476
    %1375 = vmatpush.msra.mxu0 %v472
    %1376 = vmatpush.msra.mxu0 %v468
    %1377 = vmatpush.msra.mxu0 %v464
    %1378 = vmatpush.msra.mxu0 %v460
    %1379 = vmatmul.f32.gmra.mxu0 %v133
    %v1380 = vpop.f32.mrf.mxu0
    %v1381 = vadd.f32 %v1361, %v1380
    %1382 = vdwg.mxu0
    %1383 = vmatpush.msra.mxu0 %v584
    %1384 = vmatpush.msra.mxu0 %v580
    %1385 = vmatpush.msra.mxu0 %v576
    %1386 = vmatpush.msra.mxu0 %v572
    %1387 = vmatpush.msra.mxu0 %v568
    %1388 = vmatpush.msra.mxu0 %v564
    %1389 = vmatpush.msra.mxu0 %v560
    %1390 = vmatpush.msra.mxu0 %v556
    %1391 = vmatpush.msra.mxu0 %v552
    %1392 = vmatpush.msra.mxu0 %v548
    %1393 = vmatpush.msra.mxu0 %v544
    %1394 = vmatpush.msra.mxu0 %v540
    %1395 = vmatpush.msra.mxu0 %v536
    %1396 = vmatpush.msra.mxu0 %v532
    %1397 = vmatpush.msra.mxu0 %v528
    %1398 = vmatpush.msra.mxu0 %v524
    %1399 = vmatmul.f32.gmra.mxu0 %v134
    %v1400 = vpop.f32.mrf.mxu0
    %v1401 = vadd.f32 %v1381, %v1400
    %1402 = vdwg.mxu0
    %1403 = vmatpush.msra.mxu0 %v648
    %1404 = vmatpush.msra.mxu0 %v644
    %1405 = vmatpush.msra.mxu0 %v640
    %1406 = vmatpush.msra.mxu0 %v636
    %1407 = vmatpush.msra.mxu0 %v632
    %1408 = vmatpush.msra.mxu0 %v628
    %1409 = vmatpush.msra.mxu0 %v624
    %1410 = vmatpush.msra.mxu0 %v620
    %1411 = vmatpush.msra.mxu0 %v616
    %1412 = vmatpush.msra.mxu0 %v612
    %1413 = vmatpush.msra.mxu0 %v608
    %1414 = vmatpush.msra.mxu0 %v604
    %1415 = vmatpush.msra.mxu0 %v600
    %1416 = vmatpush.msra.mxu0 %v596
    %1417 = vmatpush.msra.mxu0 %v592
    %1418 = vmatpush.msra.mxu0 %v588
    %1419 = vmatmul.f32.gmra.mxu0 %v135
    %v1420 = vpop.f32.mrf.mxu0
    %v1421 = vadd.f32 %v1401, %v1420
    %1422 = vdwg.mxu0
    %1423 = vmatpush.msra.mxu0 %v712
    %1424 = vmatpush.msra.mxu0 %v708
    %1425 = vmatpush.msra.mxu0 %v704
    %1426 = vmatpush.msra.mxu0 %v700
    %1427 = vmatpush.msra.mxu0 %v696
    %1428 = vmatpush.msra.mxu0 %v692
    %1429 = vmatpush.msra.mxu0 %v688
    %1430 = vmatpush.msra.mxu0 %v684
    %1431 = vmatpush.msra.mxu0 %v680
    %1432 = vmatpush.msra.mxu0 %v676
    %1433 = vmatpush.msra.mxu0 %v672
    %1434 = vmatpush.msra.mxu0 %v668
    %1435 = vmatpush.msra.mxu0 %v664
    %1436 = vmatpush.msra.mxu0 %v660
    %1437 = vmatpush.msra.mxu0 %v656
    %1438 = vmatpush.msra.mxu0 %v652
    %1439 = vmatmul.f32.gmra.mxu0 %v136
    %v1440 = vpop.f32.mrf.mxu0
    %v1441 = vadd.f32 %v1421, %v1440
    %1442 = vdwg.mxu0
    %v1443 = vmax.f32 %v901, 0.0
    %v1444 = vmax.f32 %v1081, 0.0
    %v1445 = vmax.f32 %v1261, 0.0
    %v1446 = vmax.f32 %v1441, 0.0
    %v1447 = vld [vmem:[#allocation8] sm:$0xff]
    %v1448 = vld [vmem:[#allocation8 + $0x8] sm:$0xff]
    %v1449 = vld [vmem:[#allocation8 + $0x10] sm:$0xff]
    %v1450 = vld [vmem:[#allocation8 + $0x18] sm:$0xff]
    %v1451 = vld [vmem:[#allocation8 + $0x20] sm:$0xff]
    %v1452 = vld [vmem:[#allocation8 + $0x28] sm:$0xff]
    %v1453 = vld [vmem:[#allocation8 + $0x30] sm:$0xff]
    %v1454 = vld [vmem:[#allocation8 + $0x38] sm:$0xff]
    %v1455 = vld [vmem:[#allocation8 + $0x40] sm:$0xff]
    %v1456 = vld [vmem:[#allocation8 + $0x48] sm:$0xff]
    %v1457 = vld [vmem:[#allocation8 + $0x50] sm:$0xff]
    %v1458 = vld [vmem:[#allocation8 + $0x58] sm:$0xff]
    %v1459 = vld [vmem:[#allocation8 + $0x60] sm:$0xff]
    %v1460 = vld [vmem:[#allocation8 + $0x68] sm:$0xff]
    %v1461 = vld [vmem:[#allocation8 + $0x70] sm:$0xff]
    %v1462 = vld [vmem:[#allocation8 + $0x78] sm:$0xff]
    %v1463 = vld [vmem:[#allocation8 + $0x80] sm:$0xff]
    %v1464 = vld [vmem:[#allocation8 + $0x88] sm:$0xff]
    %v1465 = vld [vmem:[#allocation8 + $0x90] sm:$0xff]
    %v1466 = vld [vmem:[#allocation8 + $0x98] sm:$0xff]
    %v1467 = vld [vmem:[#allocation8 + $0xa0] sm:$0xff]
    %v1468 = vld [vmem:[#allocation8 + $0xa8] sm:$0xff]
    %v1469 = vld [vmem:[#allocation8 + $0xb0] sm:$0xff]
    %v1470 = vld [vmem:[#allocation8 + $0xb8] sm:$0xff]
    %v1471 = vld [vmem:[#allocation8 + $0xc0] sm:$0xff]
    %v1472 = vld [vmem:[#allocation8 + $0xc8] sm:$0xff]
    %v1473 = vld [vmem:[#allocation8 + $0xd0] sm:$0xff]
    %v1474 = vld [vmem:[#allocation8 + $0xd8] sm:$0xff]
    %v1475 = vld [vmem:[#allocation8 + $0xe0] sm:$0xff]
    %v1476 = vld [vmem:[#allocation8 + $0xe8] sm:$0xff]
    %v1477 = vld [vmem:[#allocation8 + $0xf0] sm:$0xff]
    %v1478 = vld [vmem:[#allocation8 + $0xf8] sm:$0xff]
    %v1479 = vld [vmem:[#allocation8 + $0x100] sm:$0xff]
    %v1480 = vld [vmem:[#allocation8 + $0x108] sm:$0xff]
    %v1481 = vld [vmem:[#allocation8 + $0x110] sm:$0xff]
    %v1482 = vld [vmem:[#allocation8 + $0x118] sm:$0xff]
    %v1483 = vld [vmem:[#allocation8 + $0x120] sm:$0xff]
    %v1484 = vld [vmem:[#allocation8 + $0x128] sm:$0xff]
    %v1485 = vld [vmem:[#allocation8 + $0x130] sm:$0xff]
    %v1486 = vld [vmem:[#allocation8 + $0x138] sm:$0xff]
    %v1487 = vld [vmem:[#allocation8 + $0x140] sm:$0xff]
    %v1488 = vld [vmem:[#allocation8 + $0x148] sm:$0xff]
    %v1489 = vld [vmem:[#allocation8 + $0x150] sm:$0xff]
    %v1490 = vld [vmem:[#allocation8 + $0x158] sm:$0xff]
    %v1491 = vld [vmem:[#allocation8 + $0x160] sm:$0xff]
    %v1492 = vld [vmem:[#allocation8 + $0x168] sm:$0xff]
    %v1493 = vld [vmem:[#allocation8 + $0x170] sm:$0xff]
    %v1494 = vld [vmem:[#allocation8 + $0x178] sm:$0xff]
    %v1495 = vld [vmem:[#allocation8 + $0x180] sm:$0xff]
    %v1496 = vld [vmem:[#allocation8 + $0x188] sm:$0xff]
    %v1497 = vld [vmem:[#allocation8 + $0x190] sm:$0xff]
    %v1498 = vld [vmem:[#allocation8 + $0x198] sm:$0xff]
    %v1499 = vld [vmem:[#allocation8 + $0x1a0] sm:$0xff]
    %v1500 = vld [vmem:[#allocation8 + $0x1a8] sm:$0xff]
    %v1501 = vld [vmem:[#allocation8 + $0x1b0] sm:$0xff]
    %v1502 = vld [vmem:[#allocation8 + $0x1b8] sm:$0xff]
    %v1503 = vld [vmem:[#allocation8 + $0x1c0] sm:$0xff]
    %v1504 = vld [vmem:[#allocation8 + $0x1c8] sm:$0xff]
    %v1505 = vld [vmem:[#allocation8 + $0x1d0] sm:$0xff]
    %v1506 = vld [vmem:[#allocation8 + $0x1d8] sm:$0xff]
    %v1507 = vld [vmem:[#allocation8 + $0x1e0] sm:$0xff]
    %v1508 = vld [vmem:[#allocation8 + $0x1e8] sm:$0xff]
    %v1509 = vld [vmem:[#allocation8 + $0x1f0] sm:$0xff]
    %v1510 = vld [vmem:[#allocation8 + $0x1f8] sm:$0xff]
    %v1511 = vld [vmem:[#allocation8 + $0x200] sm:$0xff]
    %v1512 = vld [vmem:[#allocation8 + $0x208] sm:$0xff]
    %v1513 = vld [vmem:[#allocation8 + $0x210] sm:$0xff]
    %v1514 = vld [vmem:[#allocation8 + $0x218] sm:$0xff]
    %v1515 = vld [vmem:[#allocation8 + $0x220] sm:$0xff]
    %v1516 = vld [vmem:[#allocation8 + $0x228] sm:$0xff]
    %v1517 = vld [vmem:[#allocation8 + $0x230] sm:$0xff]
    %v1518 = vld [vmem:[#allocation8 + $0x238] sm:$0xff]
    %v1519 = vld [vmem:[#allocation8 + $0x240] sm:$0xff]
    %v1520 = vld [vmem:[#allocation8 + $0x248] sm:$0xff]
    %v1521 = vld [vmem:[#allocation8 + $0x250] sm:$0xff]
    %v1522 = vld [vmem:[#allocation8 + $0x258] sm:$0xff]
    %v1523 = vld [vmem:[#allocation8 + $0x260] sm:$0xff]
    %v1524 = vld [vmem:[#allocation8 + $0x268] sm:$0xff]
    %v1525 = vld [vmem:[#allocation8 + $0x270] sm:$0xff]
    %v1526 = vld [vmem:[#allocation8 + $0x278] sm:$0xff]
    %v1527 = vld [vmem:[#allocation8 + $0x280] sm:$0xff]
    %v1528 = vld [vmem:[#allocation8 + $0x288] sm:$0xff]
    %v1529 = vld [vmem:[#allocation8 + $0x290] sm:$0xff]
    %v1530 = vld [vmem:[#allocation8 + $0x298] sm:$0xff]
    %v1531 = vld [vmem:[#allocation8 + $0x2a0] sm:$0xff]
    %v1532 = vld [vmem:[#allocation8 + $0x2a8] sm:$0xff]
    %v1533 = vld [vmem:[#allocation8 + $0x2b0] sm:$0xff]
    %v1534 = vld [vmem:[#allocation8 + $0x2b8] sm:$0xff]
    %v1535 = vld [vmem:[#allocation8 + $0x2c0] sm:$0xff]
    %v1536 = vld [vmem:[#allocation8 + $0x2c8] sm:$0xff]
    %v1537 = vld [vmem:[#allocation8 + $0x2d0] sm:$0xff]
    %v1538 = vld [vmem:[#allocation8 + $0x2d8] sm:$0xff]
    %v1539 = vld [vmem:[#allocation8 + $0x2e0] sm:$0xff]
    %v1540 = vld [vmem:[#allocation8 + $0x2e8] sm:$0xff]
    %v1541 = vld [vmem:[#allocation8 + $0x2f0] sm:$0xff]
    %v1542 = vld [vmem:[#allocation8 + $0x2f8] sm:$0xff]
    %v1543 = vld [vmem:[#allocation8 + $0x300] sm:$0xff]
    %v1544 = vld [vmem:[#allocation8 + $0x308] sm:$0xff]
    %v1545 = vld [vmem:[#allocation8 + $0x310] sm:$0xff]
    %v1546 = vld [vmem:[#allocation8 + $0x318] sm:$0xff]
    %v1547 = vld [vmem:[#allocation8 + $0x320] sm:$0xff]
    %v1548 = vld [vmem:[#allocation8 + $0x328] sm:$0xff]
    %v1549 = vld [vmem:[#allocation8 + $0x330] sm:$0xff]
    %v1550 = vld [vmem:[#allocation8 + $0x338] sm:$0xff]
    %v1551 = vld [vmem:[#allocation8 + $0x340] sm:$0xff]
    %v1552 = vld [vmem:[#allocation8 + $0x348] sm:$0xff]
    %v1553 = vld [vmem:[#allocation8 + $0x350] sm:$0xff]
    %v1554 = vld [vmem:[#allocation8 + $0x358] sm:$0xff]
    %v1555 = vld [vmem:[#allocation8 + $0x360] sm:$0xff]
    %v1556 = vld [vmem:[#allocation8 + $0x368] sm:$0xff]
    %v1557 = vld [vmem:[#allocation8 + $0x370] sm:$0xff]
    %v1558 = vld [vmem:[#allocation8 + $0x378] sm:$0xff]
    %v1559 = vld [vmem:[#allocation8 + $0x380] sm:$0xff]
    %v1560 = vld [vmem:[#allocation8 + $0x388] sm:$0xff]
    %v1561 = vld [vmem:[#allocation8 + $0x390] sm:$0xff]
    %v1562 = vld [vmem:[#allocation8 + $0x398] sm:$0xff]
    %v1563 = vld [vmem:[#allocation8 + $0x3a0] sm:$0xff]
    %v1564 = vld [vmem:[#allocation8 + $0x3a8] sm:$0xff]
    %v1565 = vld [vmem:[#allocation8 + $0x3b0] sm:$0xff]
    %v1566 = vld [vmem:[#allocation8 + $0x3b8] sm:$0xff]
    %v1567 = vld [vmem:[#allocation8 + $0x3c0] sm:$0xff]
    %v1568 = vld [vmem:[#allocation8 + $0x3c8] sm:$0xff]
    %v1569 = vld [vmem:[#allocation8 + $0x3d0] sm:$0xff]
    %v1570 = vld [vmem:[#allocation8 + $0x3d8] sm:$0xff]
    %v1571 = vld [vmem:[#allocation8 + $0x3e0] sm:$0xff]
    %v1572 = vld [vmem:[#allocation8 + $0x3e8] sm:$0xff]
    %v1573 = vld [vmem:[#allocation8 + $0x3f0] sm:$0xff]
    %v1574 = vld [vmem:[#allocation8 + $0x3f8] sm:$0xff]
    %v1575 = vld [vmem:[#allocation10] sm:$0x3]
    %v1577 = vperm.slane %v1575, 0
    %v1578 = vperm.slane %v1575, 1
    %1581 = vmatpush.msra.mxu0 %v1477
    %1582 = vmatpush.msra.mxu0 %v1475
    %1583 = vmatpush.msra.mxu0 %v1473
    %1584 = vmatpush.msra.mxu0 %v1471
    %1585 = vmatpush.msra.mxu0 %v1469
    %1586 = vmatpush.msra.mxu0 %v1467
    %1587 = vmatpush.msra.mxu0 %v1465
    %1588 = vmatpush.msra.mxu0 %v1463
    %1589 = vmatpush.msra.mxu0 %v1461
    %1590 = vmatpush.msra.mxu0 %v1459
    %1591 = vmatpush.msra.mxu0 %v1457
    %1592 = vmatpush.msra.mxu0 %v1455
    %1593 = vmatpush.msra.mxu0 %v1453
    %1594 = vmatpush.msra.mxu0 %v1451
    %1595 = vmatpush.msra.mxu0 %v1449
    %1596 = vmatpush.msra.mxu0 %v1447
    %1597 = vmatmul.f32.gmra.mxu0 %v1443
    %v1598 = vpop.f32.mrf.mxu0
    %v1599 = vadd.f32 %v1577, %v1598
    %1600 = vdwg.mxu0
    %1601 = vmatpush.msra.mxu0 %v1509
    %1602 = vmatpush.msra.mxu0 %v1507
    %1603 = vmatpush.msra.mxu0 %v1505
    %1604 = vmatpush.msra.mxu0 %v1503
    %1605 = vmatpush.msra.mxu0 %v1501
    %1606 = vmatpush.msra.mxu0 %v1499
    %1607 = vmatpush.msra.mxu0 %v1497
    %1608 = vmatpush.msra.mxu0 %v1495
    %1609 = vmatpush.msra.mxu0 %v1493
    %1610 = vmatpush.msra.mxu0 %v1491
    %1611 = vmatpush.msra.mxu0 %v1489
    %1612 = vmatpush.msra.mxu0 %v1487
    %1613 = vmatpush.msra.mxu0 %v1485
    %1614 = vmatpush.msra.mxu0 %v1483
    %1615 = vmatpush.msra.mxu0 %v1481
    %1616 = vmatpush.msra.mxu0 %v1479
    %1617 = vmatmul.f32.gmra.mxu0 %v1444
    %v1618 = vpop.f32.mrf.mxu0
    %v1619 = vadd.f32 %v1599, %v1618
    %1620 = vdwg.mxu0
    %1621 = vmatpush.msra.mxu0 %v1541
    %1622 = vmatpush.msra.mxu0 %v1539
    %1623 = vmatpush.msra.mxu0 %v1537
    %1624 = vmatpush.msra.mxu0 %v1535
    %1625 = vmatpush.msra.mxu0 %v1533
    %1626 = vmatpush.msra.mxu0 %v1531
    %1627 = vmatpush.msra.mxu0 %v1529
    %1628 = vmatpush.msra.mxu0 %v1527
    %1629 = vmatpush.msra.mxu0 %v1525
    %1630 = vmatpush.msra.mxu0 %v1523
    %1631 = vmatpush.msra.mxu0 %v1521
    %1632 = vmatpush.msra.mxu0 %v1519
    %1633 = vmatpush.msra.mxu0 %v1517
    %1634 = vmatpush.msra.mxu0 %v1515
    %1635 = vmatpush.msra.mxu0 %v1513
    %1636 = vmatpush.msra.mxu0 %v1511
    %1637 = vmatmul.f32.gmra.mxu0 %v1445
    %v1638 = vpop.f32.mrf.mxu0
    %v1639 = vadd.f32 %v1619, %v1638
    %1640 = vdwg.mxu0
    %1641 = vmatpush.msra.mxu0 %v1573
    %1642 = vmatpush.msra.mxu0 %v1571
    %1643 = vmatpush.msra.mxu0 %v1569
    %1644 = vmatpush.msra.mxu0 %v1567
    %1645 = vmatpush.msra.mxu0 %v1565
    %1646 = vmatpush.msra.mxu0 %v1563
    %1647 = vmatpush.msra.mxu0 %v1561
    %1648 = vmatpush.msra.mxu0 %v1559
    %1649 = vmatpush.msra.mxu0 %v1557
    %1650 = vmatpush.msra.mxu0 %v1555
    %1651 = vmatpush.msra.mxu0 %v1553
    %1652 = vmatpush.msra.mxu0 %v1551
    %1653 = vmatpush.msra.mxu0 %v1549
    %1654 = vmatpush.msra.mxu0 %v1547
    %1655 = vmatpush.msra.mxu0 %v1545
    %1656 = vmatpush.msra.mxu0 %v1543
    %1657 = vmatmul.f32.gmra.mxu0 %v1446
    %v1658 = vpop.f32.mrf.mxu0
    %v1659 = vadd.f32 %v1639, %v1658
    %1660 = vdwg.mxu0
    %1661 = vmatpush.msra.mxu0 %v1478
    %1662 = vmatpush.msra.mxu0 %v1476
    %1663 = vmatpush.msra.mxu0 %v1474
    %1664 = vmatpush.msra.mxu0 %v1472
    %1665 = vmatpush.msra.mxu0 %v1470
    %1666 = vmatpush.msra.mxu0 %v1468
    %1667 = vmatpush.msra.mxu0 %v1466
    %1668 = vmatpush.msra.mxu0 %v1464
    %1669 = vmatpush.msra.mxu0 %v1462
    %1670 = vmatpush.msra.mxu0 %v1460
    %1671 = vmatpush.msra.mxu0 %v1458
    %1672 = vmatpush.msra.mxu0 %v1456
    %1673 = vmatpush.msra.mxu0 %v1454
    %1674 = vmatpush.msra.mxu0 %v1452
    %1675 = vmatpush.msra.mxu0 %v1450
    %1676 = vmatpush.msra.mxu0 %v1448
    %1677 = vmatmul.f32.gmra.mxu0 %v1443
    %v1678 = vpop.f32.mrf.mxu0
    %v1679 = vadd.f32 %v1578, %v1678
    %1680 = vdwg.mxu0
    %1681 = vmatpush.msra.mxu0 %v1510
    %1682 = vmatpush.msra.mxu0 %v1508
    %1683 = vmatpush.msra.mxu0 %v1506
    %1684 = vmatpush.msra.mxu0 %v1504
    %1685 = vmatpush.msra.mxu0 %v1502
    %1686 = vmatpush.msra.mxu0 %v1500
    %1687 = vmatpush.msra.mxu0 %v1498
    %1688 = vmatpush.msra.mxu0 %v1496
    %1689 = vmatpush.msra.mxu0 %v1494
    %1690 = vmatpush.msra.mxu0 %v1492
    %1691 = vmatpush.msra.mxu0 %v1490
    %1692 = vmatpush.msra.mxu0 %v1488
    %1693 = vmatpush.msra.mxu0 %v1486
    %1694 = vmatpush.msra.mxu0 %v1484
    %1695 = vmatpush.msra.mxu0 %v1482
    %1696 = vmatpush.msra.mxu0 %v1480
    %1697 = vmatmul.f32.gmra.mxu0 %v1444
    %v1698 = vpop.f32.mrf.mxu0
    %v1699 = vadd.f32 %v1679, %v1698
    %1700 = vdwg.mxu0
    %1701 = vmatpush.msra.mxu0 %v1542
    %1702 = vmatpush.msra.mxu0 %v1540
    %1703 = vmatpush.msra.mxu0 %v1538
    %1704 = vmatpush.msra.mxu0 %v1536
    %1705 = vmatpush.msra.mxu0 %v1534
    %1706 = vmatpush.msra.mxu0 %v1532
    %1707 = vmatpush.msra.mxu0 %v1530
    %1708 = vmatpush.msra.mxu0 %v1528
    %1709 = vmatpush.msra.mxu0 %v1526
    %1710 = vmatpush.msra.mxu0 %v1524
    %1711 = vmatpush.msra.mxu0 %v1522
    %1712 = vmatpush.msra.mxu0 %v1520
    %1713 = vmatpush.msra.mxu0 %v1518
    %1714 = vmatpush.msra.mxu0 %v1516
    %1715 = vmatpush.msra.mxu0 %v1514
    %1716 = vmatpush.msra.mxu0 %v1512
    %1717 = vmatmul.f32.gmra.mxu0 %v1445
    %v1718 = vpop.f32.mrf.mxu0
    %v1719 = vadd.f32 %v1699, %v1718
    %1720 = vdwg.mxu0
    %1721 = vmatpush.msra.mxu0 %v1574
    %1722 = vmatpush.msra.mxu0 %v1572
    %1723 = vmatpush.msra.mxu0 %v1570
    %1724 = vmatpush.msra.mxu0 %v1568
    %1725 = vmatpush.msra.mxu0 %v1566
    %1726 = vmatpush.msra.mxu0 %v1564
    %1727 = vmatpush.msra.mxu0 %v1562
    %1728 = vmatpush.msra.mxu0 %v1560
    %1729 = vmatpush.msra.mxu0 %v1558
    %1730 = vmatpush.msra.mxu0 %v1556
    %1731 = vmatpush.msra.mxu0 %v1554
    %1732 = vmatpush.msra.mxu0 %v1552
    %1733 = vmatpush.msra.mxu0 %v1550
    %1734 = vmatpush.msra.mxu0 %v1548
    %1735 = vmatpush.msra.mxu0 %v1546
    %1736 = vmatpush.msra.mxu0 %v1544
    %1737 = vmatmul.f32.gmra.mxu0 %v1446
    %v1738 = vpop.f32.mrf.mxu0
    %v1739 = vadd.f32 %v1719, %v1738
    %1740 = vdwg.mxu0
    %v1741 = vmax.f32 %v1659, 0.0
    %v1742 = vmax.f32 %v1739, 0.0
    %v1743 = vld [vmem:[#allocation11] sm:$0xff]
    %v1744 = vld [vmem:[#allocation11 + $0x8] sm:$0xff]
    %v1745 = vld [vmem:[#allocation11 + $0x10] sm:$0xff]
    %v1746 = vld [vmem:[#allocation11 + $0x18] sm:$0xff]
    %v1747 = vld [vmem:[#allocation11 + $0x20] sm:$0xff]
    %v1748 = vld [vmem:[#allocation11 + $0x28] sm:$0xff]
    %v1749 = vld [vmem:[#allocation11 + $0x30] sm:$0xff]
    %v1750 = vld [vmem:[#allocation11 + $0x38] sm:$0xff]
    %v1751 = vld [vmem:[#allocation11 + $0x40] sm:$0xff]
    %v1752 = vld [vmem:[#allocation11 + $0x48] sm:$0xff]
    %v1753 = vld [vmem:[#allocation11 + $0x50] sm:$0xff]
    %v1754 = vld [vmem:[#allocation11 + $0x58] sm:$0xff]
    %v1755 = vld [vmem:[#allocation11 + $0x60] sm:$0xff]
    %v1756 = vld [vmem:[#allocation11 + $0x68] sm:$0xff]
    %v1757 = vld [vmem:[#allocation11 + $0x70] sm:$0xff]
    %v1758 = vld [vmem:[#allocation11 + $0x78] sm:$0xff]
    %v1759 = vld [vmem:[#allocation11 + $0x80] sm:$0xff]
    %v1760 = vld [vmem:[#allocation11 + $0x88] sm:$0xff]
    %v1761 = vld [vmem:[#allocation11 + $0x90] sm:$0xff]
    %v1762 = vld [vmem:[#allocation11 + $0x98] sm:$0xff]
    %v1763 = vld [vmem:[#allocation11 + $0xa0] sm:$0xff]
    %v1764 = vld [vmem:[#allocation11 + $0xa8] sm:$0xff]
    %v1765 = vld [vmem:[#allocation11 + $0xb0] sm:$0xff]
    %v1766 = vld [vmem:[#allocation11 + $0xb8] sm:$0xff]
    %v1767 = vld [vmem:[#allocation11 + $0xc0] sm:$0xff]
    %v1768 = vld [vmem:[#allocation11 + $0xc8] sm:$0xff]
    %v1769 = vld [vmem:[#allocation11 + $0xd0] sm:$0xff]
    %v1770 = vld [vmem:[#allocation11 + $0xd8] sm:$0xff]
    %v1771 = vld [vmem:[#allocation11 + $0xe0] sm:$0xff]
    %v1772 = vld [vmem:[#allocation11 + $0xe8] sm:$0xff]
    %v1773 = vld [vmem:[#allocation11 + $0xf0] sm:$0xff]
    %v1774 = vld [vmem:[#allocation11 + $0xf8] sm:$0xff]
    %v1775 = vld [vmem:[#allocation13] sm:$0x1]
    %v1777 = vperm.slane %v1775, 0
    %1779 = vmatpush.msra.mxu0 %v1758
    %1780 = vmatpush.msra.mxu0 %v1757
    %1781 = vmatpush.msra.mxu0 %v1756
    %1782 = vmatpush.msra.mxu0 %v1755
    %1783 = vmatpush.msra.mxu0 %v1754
    %1784 = vmatpush.msra.mxu0 %v1753
    %1785 = vmatpush.msra.mxu0 %v1752
    %1786 = vmatpush.msra.mxu0 %v1751
    %1787 = vmatpush.msra.mxu0 %v1750
    %1788 = vmatpush.msra.mxu0 %v1749
    %1789 = vmatpush.msra.mxu0 %v1748
    %1790 = vmatpush.msra.mxu0 %v1747
    %1791 = vmatpush.msra.mxu0 %v1746
    %1792 = vmatpush.msra.mxu0 %v1745
    %1793 = vmatpush.msra.mxu0 %v1744
    %1794 = vmatpush.msra.mxu0 %v1743
    %1795 = vmatmul.f32.gmra.mxu0 %v1741
    %v1796 = vpop.f32.mrf.mxu0
    %v1797 = vadd.f32 %v1777, %v1796
    %1798 = vdwg.mxu0
    %1799 = vmatpush.msra.mxu0 %v1774
    %1800 = vmatpush.msra.mxu0 %v1773
    %1801 = vmatpush.msra.mxu0 %v1772
    %1802 = vmatpush.msra.mxu0 %v1771
    %1803 = vmatpush.msra.mxu0 %v1770
    %1804 = vmatpush.msra.mxu0 %v1769
    %1805 = vmatpush.msra.mxu0 %v1768
    %1806 = vmatpush.msra.mxu0 %v1767
    %1807 = vmatpush.msra.mxu0 %v1766
    %1808 = vmatpush.msra.mxu0 %v1765
    %1809 = vmatpush.msra.mxu0 %v1764
    %1810 = vmatpush.msra.mxu0 %v1763
    %1811 = vmatpush.msra.mxu0 %v1762
    %1812 = vmatpush.msra.mxu0 %v1761
    %1813 = vmatpush.msra.mxu0 %v1760
    %1814 = vmatpush.msra.mxu0 %v1759
    %1815 = vmatmul.f32.gmra.mxu0 %v1742
    %v1816 = vpop.f32.mrf.mxu0
    %v1817 = vadd.f32 %v1797, %v1816
    %1818 = vdwg.mxu0
    %1819 = vst [vmem:[#allocation14] sm:$0xff] %v1817
    // Predicated region
    $region58: #{tpu_custom_call.1} parent=1 // pred_check
      _
    $region59: #{tpu_custom_call.1} parent=1 // pred_check_branch
      %1821 = sbr.rel (0) target = $region61
    $region60: #{tpu_custom_call.1} parent=1 // pred_region
      %1823 = vsyncadd [#allocation4], 0
      %s1825 = sshll.u32 [#allocation14], 4
      %s1826 = int_to_ptr.vmem [resolvable:$true] %s1825
      %s1827 = sshll.u32 %s7, 4
      %s1828 = int_to_ptr.hbm [resolvable:$true] %s1827
      %1830 = dma.vmem_to_hbm [thread:$0]  %s1826, 128, %s1828, [#allocation4]
    $region61: #{tpu_custom_call.1} parent=1 // pred_fallthru
      _
    // Predicated region
    $region62: #{tpu_custom_call.1} parent=1 // pred_check
      _
    $region63: #{tpu_custom_call.1} parent=1 // pred_check_branch
      %1832 = sbr.rel (0) target = $region65
    $region64: #{tpu_custom_call.1} parent=1 // pred_region
      %1834 = dma.done [#allocation4], 128
    $region65: #{tpu_custom_call.1} parent=1 // pred_fallthru
      _
    %1835 = vsyncpa [#allocation3], 1
    %1836 = vsyncpa [#allocation6], 1
    %1837 = vsyncpa [#allocation9], 1
    %1838 = vsyncpa [#allocation12], 1
    %1839 = vsyncpa [#allocation4], 1

</llo_original>
